<compile_context>
chip_gen: v7x
topology: tpu7x:2x2x1
jax: 0.10.0
libtpu: 0.0.40
codegen_flags: <defaults>
</compile_context>

<pallas_src>
import jax
import jax.numpy as jnp
from jax.experimental import pallas as pl
from jax.experimental.pallas import tpu as pltpu


@jax.jit
def model_forward(x_nchw, weight_oihw):
    n, cin, h, w = x_nchw.shape
    cout, _, kh, kw = weight_oihw.shape
    ho, wo = h - kh + 1, w - kw + 1
    l = ho * wo

    x_f32 = x_nchw.astype(jnp.float32)

    # Weight glue: OIHW -> (KH, KW, Cin, Cout) -> (KH*KW, Cin, Cout),
    # with the 1/L mean factor folded in.
    w_taps = (
        jnp.transpose(weight_oihw, (2, 3, 1, 0))
        .reshape(kh * kw, cin, cout)
        .astype(jnp.float32)
        / float(l)
    )

    def conv_mean_kernel(x_ref, w_ref, o_ref):
        # x_ref: (N, Cin, H, W)      full input batch, f32
        # w_ref: (KH*KW, Cin, Cout)  conv weight per tap, pre-scaled by 1/L
        # o_ref: (N, Cout)           per-(image, channel) spatial mean of conv
        x = x_ref[...]

        # Shared column-window sums: for each kernel column offset j, reduce
        # the Wo-wide lane window once and reuse it for all KH row offsets.
        col_sums = [
            jnp.sum(x[:, :, :, j:j + wo], axis=3)  # (N, Cin, H)
            for j in range(kw)
        ]

        acc = jnp.zeros((n, cout), jnp.float32)
        for i in range(kh):
            for j in range(kw):
                # Window sum for tap (i, j): rows i..i+Ho-1 of col_sums[j].
                win_sum = jnp.sum(col_sums[j][:, :, i:i + ho], axis=2)  # (N, Cin)
                acc = acc + jnp.dot(
                    win_sum,
                    w_ref[i * kw + j],  # (Cin, Cout)
                    preferred_element_type=jnp.float32,
                )
        o_ref[...] = acc  # single (N, Cout) slab store

    flops = 2 * kh * kw * (n * cin * ho * wo + n * cin * cout)
    bytes_accessed = 4 * (x_f32.size + w_taps.size + n * cout)

    means = pl.pallas_call(
        conv_mean_kernel,
        out_shape=jax.ShapeDtypeStruct((n, cout), jnp.float32),
        grid_spec=pltpu.PrefetchScalarGridSpec(
            num_scalar_prefetch=0,
            grid=(1,),  # single invocation: whole batch in one step
            in_specs=[
                pl.BlockSpec((n, cin, h, w), lambda g: (0, 0, 0, 0)),
                pl.BlockSpec((kh * kw, cin, cout), lambda g: (0, 0, 0)),
            ],
            out_specs=pl.BlockSpec((n, cout), lambda g: (0, 0)),
        ),
        compiler_params=pltpu.CompilerParams(
            dimension_semantics=("arbitrary",)),
        cost_estimate=pl.CostEstimate(
            flops=int(flops), transcendentals=0,
            bytes_accessed=int(bytes_accessed)),
    )(x_f32, w_taps)  # (N, Cout)

    # torch glue: view(N,C,L) -> reshape(C,N,L) -> mean(dim=2) reduces, for a
    # contiguous tensor, to reinterpreting the row-major (N, Cout) mean matrix
    # as (Cout, N).
    return means.reshape(-1).reshape(cout, n)


if __name__ == "__main__":
    key = jax.random.PRNGKey(0)
    kx, kw_ = jax.random.split(key)

    N, Cin, H, W = 2, 3, 16, 16
    Cout, KH, KW = 32, 3, 3

    x = jax.random.normal(kx, (N, Cin, H, W), dtype=jnp.float32)
    bound = 1.0 / (Cin * KH * KW) ** 0.5  # deterministic Conv2d-style init
    weight = jax.random.uniform(
        kw_, (Cout, Cin, KH, KW), minval=-bound, maxval=bound, dtype=jnp.float32
    )

    out = jax.block_until_ready(model_forward(x, weight))
    assert out.shape == (Cout, N), out.shape

    # Pure-JAX reference reproducing the exact torch op chain
    # (conv -> view(N,C,L) -> reshape(C,N,L) -> mean(dim=2)); jnp.reshape on a
    # row-major array matches torch's contiguous view/reshape semantics.
    conv_ref = jax.lax.conv_general_dilated(
        x, weight, window_strides=(1, 1), padding="VALID",
        dimension_numbers=("NCHW", "OIHW", "NCHW"))
    ref = conv_ref.reshape(N, Cout, -1).reshape(Cout, N, -1).mean(axis=2)

    assert jnp.allclose(out, ref, atol=1e-4, rtol=1e-4), \
        float(jnp.max(jnp.abs(out - ref)))

    # TODO(synk): the torch forward's print(x.shape) side effects are not
    # reproduced (no effect on the returned value).
    print("KERNEL_OK")
</pallas_src>

<mosaic_0001>
module attributes {stable_mosaic.version = 11 : i64} {
  func.func @conv_mean_kernel(%arg0: i32, %arg1: memref<2x3x16x16xf32, #tpu.memory_space<vmem>>, %arg2: memref<9x3x32xf32, #tpu.memory_space<vmem>>, %arg3: memref<2x32xf32, #tpu.memory_space<vmem>>) attributes {dimension_semantics = [#tpu.dimension_semantics<arbitrary>], iteration_bounds = array<i64: 1>, scalar_prefetch = 0 : i64, scratch_operands = 0 : i64, tpu.core_type = #tpu.core_type<tc>, window_params = [{pipeline_mode = #tpu.pipeline_mode<synchronous>, transform_indices = @transform_0, window_bounds = array<i64: 2, 3, 16, 16>}, {pipeline_mode = #tpu.pipeline_mode<synchronous>, transform_indices = @transform_1, window_bounds = array<i64: 9, 3, 32>}, {pipeline_mode = #tpu.pipeline_mode<synchronous>, transform_indices = @transform_2, window_bounds = array<i64: 2, 32>}]} {
    %c0 = arith.constant 0 : index
    %c0_0 = arith.constant 0 : index
    %c0_1 = arith.constant 0 : index
    %c0_2 = arith.constant 0 : index
    %0 = vector.load %arg1[%c0, %c0_0, %c0_1, %c0_2] : memref<2x3x16x16xf32, #tpu.memory_space<vmem>>, vector<2x3x16x16xf32>
    %1 = vector.extract_strided_slice %0 {offsets = [0, 0, 0, 0], sizes = [2, 3, 16, 14], strides = [1, 1, 1, 1]} : vector<2x3x16x16xf32> to vector<2x3x16x14xf32>
    %cst = arith.constant dense<0.000000e+00> : vector<2x3x16xf32>
    %2 = vector.multi_reduction <add>, %1, %cst [3] : vector<2x3x16x14xf32> to vector<2x3x16xf32>
    %3 = vector.extract_strided_slice %0 {offsets = [0, 0, 0, 1], sizes = [2, 3, 16, 14], strides = [1, 1, 1, 1]} : vector<2x3x16x16xf32> to vector<2x3x16x14xf32>
    %cst_3 = arith.constant dense<0.000000e+00> : vector<2x3x16xf32>
    %4 = vector.multi_reduction <add>, %3, %cst_3 [3] : vector<2x3x16x14xf32> to vector<2x3x16xf32>
    %5 = vector.extract_strided_slice %0 {offsets = [0, 0, 0, 2], sizes = [2, 3, 16, 14], strides = [1, 1, 1, 1]} : vector<2x3x16x16xf32> to vector<2x3x16x14xf32>
    %cst_4 = arith.constant dense<0.000000e+00> : vector<2x3x16xf32>
    %6 = vector.multi_reduction <add>, %5, %cst_4 [3] : vector<2x3x16x14xf32> to vector<2x3x16xf32>
    %cst_5 = arith.constant 0.000000e+00 : f32
    %7 = vector.broadcast %cst_5 : f32 to vector<2x32xf32>
    %8 = vector.extract_strided_slice %2 {offsets = [0, 0, 0], sizes = [2, 3, 14], strides = [1, 1, 1]} : vector<2x3x16xf32> to vector<2x3x14xf32>
    %cst_6 = arith.constant dense<0.000000e+00> : vector<2x3xf32>
    %9 = vector.multi_reduction <add>, %8, %cst_6 [2] : vector<2x3x14xf32> to vector<2x3xf32>
    %c0_7 = arith.constant 0 : index
    %c0_8 = arith.constant 0 : index
    %c0_9 = arith.constant 0 : index
    %10 = vector.load %arg2[%c0_7, %c0_8, %c0_9] : memref<9x3x32xf32, #tpu.memory_space<vmem>>, vector<1x3x32xf32>
    %11 = vector.shape_cast %10 : vector<1x3x32xf32> to vector<3x32xf32>
    %cst_10 = arith.constant dense<0.000000e+00> : vector<2x32xf32>
    %12 = tpu.matmul %9, %11, %cst_10 {dimension_numbers = #tpu.dot_dimension_numbers<[1], [0], [0], [1], [0, 0, 1, 1], [], []>} : vector<2x3xf32>, vector<3x32xf32>, vector<2x32xf32> -> vector<2x32xf32>
    %13 = arith.addf %7, %12 : vector<2x32xf32>
    %14 = vector.extract_strided_slice %4 {offsets = [0, 0, 0], sizes = [2, 3, 14], strides = [1, 1, 1]} : vector<2x3x16xf32> to vector<2x3x14xf32>
    %cst_11 = arith.constant dense<0.000000e+00> : vector<2x3xf32>
    %15 = vector.multi_reduction <add>, %14, %cst_11 [2] : vector<2x3x14xf32> to vector<2x3xf32>
    %c1 = arith.constant 1 : index
    %c0_12 = arith.constant 0 : index
    %c0_13 = arith.constant 0 : index
    %16 = vector.load %arg2[%c1, %c0_12, %c0_13] : memref<9x3x32xf32, #tpu.memory_space<vmem>>, vector<1x3x32xf32>
    %17 = vector.shape_cast %16 : vector<1x3x32xf32> to vector<3x32xf32>
    %cst_14 = arith.constant dense<0.000000e+00> : vector<2x32xf32>
    %18 = tpu.matmul %15, %17, %cst_14 {dimension_numbers = #tpu.dot_dimension_numbers<[1], [0], [0], [1], [0, 0, 1, 1], [], []>} : vector<2x3xf32>, vector<3x32xf32>, vector<2x32xf32> -> vector<2x32xf32>
    %19 = arith.addf %13, %18 : vector<2x32xf32>
    %20 = vector.extract_strided_slice %6 {offsets = [0, 0, 0], sizes = [2, 3, 14], strides = [1, 1, 1]} : vector<2x3x16xf32> to vector<2x3x14xf32>
    %cst_15 = arith.constant dense<0.000000e+00> : vector<2x3xf32>
    %21 = vector.multi_reduction <add>, %20, %cst_15 [2] : vector<2x3x14xf32> to vector<2x3xf32>
    %c2 = arith.constant 2 : index
    %c0_16 = arith.constant 0 : index
    %c0_17 = arith.constant 0 : index
    %22 = vector.load %arg2[%c2, %c0_16, %c0_17] : memref<9x3x32xf32, #tpu.memory_space<vmem>>, vector<1x3x32xf32>
    %23 = vector.shape_cast %22 : vector<1x3x32xf32> to vector<3x32xf32>
    %cst_18 = arith.constant dense<0.000000e+00> : vector<2x32xf32>
    %24 = tpu.matmul %21, %23, %cst_18 {dimension_numbers = #tpu.dot_dimension_numbers<[1], [0], [0], [1], [0, 0, 1, 1], [], []>} : vector<2x3xf32>, vector<3x32xf32>, vector<2x32xf32> -> vector<2x32xf32>
    %25 = arith.addf %19, %24 : vector<2x32xf32>
    %26 = vector.extract_strided_slice %2 {offsets = [0, 0, 1], sizes = [2, 3, 14], strides = [1, 1, 1]} : vector<2x3x16xf32> to vector<2x3x14xf32>
    %cst_19 = arith.constant dense<0.000000e+00> : vector<2x3xf32>
    %27 = vector.multi_reduction <add>, %26, %cst_19 [2] : vector<2x3x14xf32> to vector<2x3xf32>
    %c3 = arith.constant 3 : index
    %c0_20 = arith.constant 0 : index
    %c0_21 = arith.constant 0 : index
    %28 = vector.load %arg2[%c3, %c0_20, %c0_21] : memref<9x3x32xf32, #tpu.memory_space<vmem>>, vector<1x3x32xf32>
    %29 = vector.shape_cast %28 : vector<1x3x32xf32> to vector<3x32xf32>
    %cst_22 = arith.constant dense<0.000000e+00> : vector<2x32xf32>
    %30 = tpu.matmul %27, %29, %cst_22 {dimension_numbers = #tpu.dot_dimension_numbers<[1], [0], [0], [1], [0, 0, 1, 1], [], []>} : vector<2x3xf32>, vector<3x32xf32>, vector<2x32xf32> -> vector<2x32xf32>
    %31 = arith.addf %25, %30 : vector<2x32xf32>
    %32 = vector.extract_strided_slice %4 {offsets = [0, 0, 1], sizes = [2, 3, 14], strides = [1, 1, 1]} : vector<2x3x16xf32> to vector<2x3x14xf32>
    %cst_23 = arith.constant dense<0.000000e+00> : vector<2x3xf32>
    %33 = vector.multi_reduction <add>, %32, %cst_23 [2] : vector<2x3x14xf32> to vector<2x3xf32>
    %c4 = arith.constant 4 : index
    %c0_24 = arith.constant 0 : index
    %c0_25 = arith.constant 0 : index
    %34 = vector.load %arg2[%c4, %c0_24, %c0_25] : memref<9x3x32xf32, #tpu.memory_space<vmem>>, vector<1x3x32xf32>
    %35 = vector.shape_cast %34 : vector<1x3x32xf32> to vector<3x32xf32>
    %cst_26 = arith.constant dense<0.000000e+00> : vector<2x32xf32>
    %36 = tpu.matmul %33, %35, %cst_26 {dimension_numbers = #tpu.dot_dimension_numbers<[1], [0], [0], [1], [0, 0, 1, 1], [], []>} : vector<2x3xf32>, vector<3x32xf32>, vector<2x32xf32> -> vector<2x32xf32>
    %37 = arith.addf %31, %36 : vector<2x32xf32>
    %38 = vector.extract_strided_slice %6 {offsets = [0, 0, 1], sizes = [2, 3, 14], strides = [1, 1, 1]} : vector<2x3x16xf32> to vector<2x3x14xf32>
    %cst_27 = arith.constant dense<0.000000e+00> : vector<2x3xf32>
    %39 = vector.multi_reduction <add>, %38, %cst_27 [2] : vector<2x3x14xf32> to vector<2x3xf32>
    %c5 = arith.constant 5 : index
    %c0_28 = arith.constant 0 : index
    %c0_29 = arith.constant 0 : index
    %40 = vector.load %arg2[%c5, %c0_28, %c0_29] : memref<9x3x32xf32, #tpu.memory_space<vmem>>, vector<1x3x32xf32>
    %41 = vector.shape_cast %40 : vector<1x3x32xf32> to vector<3x32xf32>
    %cst_30 = arith.constant dense<0.000000e+00> : vector<2x32xf32>
    %42 = tpu.matmul %39, %41, %cst_30 {dimension_numbers = #tpu.dot_dimension_numbers<[1], [0], [0], [1], [0, 0, 1, 1], [], []>} : vector<2x3xf32>, vector<3x32xf32>, vector<2x32xf32> -> vector<2x32xf32>
    %43 = arith.addf %37, %42 : vector<2x32xf32>
    %44 = vector.extract_strided_slice %2 {offsets = [0, 0, 2], sizes = [2, 3, 14], strides = [1, 1, 1]} : vector<2x3x16xf32> to vector<2x3x14xf32>
    %cst_31 = arith.constant dense<0.000000e+00> : vector<2x3xf32>
    %45 = vector.multi_reduction <add>, %44, %cst_31 [2] : vector<2x3x14xf32> to vector<2x3xf32>
    %c6 = arith.constant 6 : index
    %c0_32 = arith.constant 0 : index
    %c0_33 = arith.constant 0 : index
    %46 = vector.load %arg2[%c6, %c0_32, %c0_33] : memref<9x3x32xf32, #tpu.memory_space<vmem>>, vector<1x3x32xf32>
    %47 = vector.shape_cast %46 : vector<1x3x32xf32> to vector<3x32xf32>
    %cst_34 = arith.constant dense<0.000000e+00> : vector<2x32xf32>
    %48 = tpu.matmul %45, %47, %cst_34 {dimension_numbers = #tpu.dot_dimension_numbers<[1], [0], [0], [1], [0, 0, 1, 1], [], []>} : vector<2x3xf32>, vector<3x32xf32>, vector<2x32xf32> -> vector<2x32xf32>
    %49 = arith.addf %43, %48 : vector<2x32xf32>
    %50 = vector.extract_strided_slice %4 {offsets = [0, 0, 2], sizes = [2, 3, 14], strides = [1, 1, 1]} : vector<2x3x16xf32> to vector<2x3x14xf32>
    %cst_35 = arith.constant dense<0.000000e+00> : vector<2x3xf32>
    %51 = vector.multi_reduction <add>, %50, %cst_35 [2] : vector<2x3x14xf32> to vector<2x3xf32>
    %c7 = arith.constant 7 : index
    %c0_36 = arith.constant 0 : index
    %c0_37 = arith.constant 0 : index
    %52 = vector.load %arg2[%c7, %c0_36, %c0_37] : memref<9x3x32xf32, #tpu.memory_space<vmem>>, vector<1x3x32xf32>
    %53 = vector.shape_cast %52 : vector<1x3x32xf32> to vector<3x32xf32>
    %cst_38 = arith.constant dense<0.000000e+00> : vector<2x32xf32>
    %54 = tpu.matmul %51, %53, %cst_38 {dimension_numbers = #tpu.dot_dimension_numbers<[1], [0], [0], [1], [0, 0, 1, 1], [], []>} : vector<2x3xf32>, vector<3x32xf32>, vector<2x32xf32> -> vector<2x32xf32>
    %55 = arith.addf %49, %54 : vector<2x32xf32>
    %56 = vector.extract_strided_slice %6 {offsets = [0, 0, 2], sizes = [2, 3, 14], strides = [1, 1, 1]} : vector<2x3x16xf32> to vector<2x3x14xf32>
    %cst_39 = arith.constant dense<0.000000e+00> : vector<2x3xf32>
    %57 = vector.multi_reduction <add>, %56, %cst_39 [2] : vector<2x3x14xf32> to vector<2x3xf32>
    %c8 = arith.constant 8 : index
    %c0_40 = arith.constant 0 : index
    %c0_41 = arith.constant 0 : index
    %58 = vector.load %arg2[%c8, %c0_40, %c0_41] : memref<9x3x32xf32, #tpu.memory_space<vmem>>, vector<1x3x32xf32>
    %59 = vector.shape_cast %58 : vector<1x3x32xf32> to vector<3x32xf32>
    %cst_42 = arith.constant dense<0.000000e+00> : vector<2x32xf32>
    %60 = tpu.matmul %57, %59, %cst_42 {dimension_numbers = #tpu.dot_dimension_numbers<[1], [0], [0], [1], [0, 0, 1, 1], [], []>} : vector<2x3xf32>, vector<3x32xf32>, vector<2x32xf32> -> vector<2x32xf32>
    %61 = arith.addf %55, %60 : vector<2x32xf32>
    %c0_43 = arith.constant 0 : index
    %c0_44 = arith.constant 0 : index
    %62 = vector.load %arg3[%c0_43, %c0_44] : memref<2x32xf32, #tpu.memory_space<vmem>>, vector<2x32xf32>
    tpu.vector_store %arg3[%c0_43, %c0_44], %61 {strides = array<i32>} : memref<2x32xf32, #tpu.memory_space<vmem>>, vector<2x32xf32>,
    return
  }
  func.func @transform_0(%arg0: i32) -> (i32, i32, i32, i32) {
    %c0_i32 = arith.constant 0 : i32
    %c0_i32_0 = arith.constant 0 : i32
    %c0_i32_1 = arith.constant 0 : i32
    %c0_i32_2 = arith.constant 0 : i32
    %c0_i32_3 = arith.constant 0 : i32
    return %c0_i32, %c0_i32_0, %c0_i32_1, %c0_i32_2 : i32, i32, i32, i32
  }
  func.func @transform_1(%arg0: i32) -> (i32, i32, i32) {
    %c0_i32 = arith.constant 0 : i32
    %c0_i32_0 = arith.constant 0 : i32
    %c0_i32_1 = arith.constant 0 : i32
    %c0_i32_2 = arith.constant 0 : i32
    return %c0_i32, %c0_i32_0, %c0_i32_1 : i32, i32, i32
  }
  func.func @transform_2(%arg0: i32) -> (i32, i32) {
    %c0_i32 = arith.constant 0 : i32
    %c0_i32_0 = arith.constant 0 : i32
    %c0_i32_1 = arith.constant 0 : i32
    return %c0_i32, %c0_i32_0 : i32, i32
  }
}

</mosaic_0001>

<llo_original>
// kernel: model_forward.1
$region0: #{model_forward.1}
  #allocation0 [shape = 'u32[]', space=smem, size = 0x4, offset = 0x4, fixed_abs, tag = 'smem constant byte address 0x4 - core index']
  #allocation1 [shape = 'u32[144,128]{1,0:T(1,128)}', space=vmem, size = 0x12000, scoped, tag = 'internal scratch']
  %s0 = inlined_call_operand.vmem [shape: f32[2,3,16,16], index: 0, kind: input, shape index: {}]
  %s1 = inlined_call_operand.vmem [shape: f32[9,3,32], index: 1, kind: input, shape index: {}]
  %s2 = inlined_call_operand.vmem [shape: f32[2,32], index: 2, kind: output, shape index: {}]
  %s3 = sld [smem:[#allocation0]]
  $region18: #{model_forward.1} parent=0
    _
  %s5 = ssub.s32 1, %s3
  %s6 = scalar_select 0, %s5, %s3
  // Predicated region
  $region2: #{model_forward.1} parent=0 // pred_check
    _
  $region3: #{model_forward.1} parent=0 // pred_check_branch
    %8 = sbr.rel (0) target = $region5
  $region4: #{model_forward.1} parent=0 // pred_region
    _
  $region5: #{model_forward.1} parent=0 // pred_fallthru
    _
  // Predicated region
  $region6: #{model_forward.1} parent=0 // pred_check
    _
  $region7: #{model_forward.1} parent=0 // pred_check_branch
    %10 = sbr.rel (0) target = $region9
  $region8: #{model_forward.1} parent=0 // pred_region
    _
  $region9: #{model_forward.1} parent=0 // pred_fallthru
    _
  %v11 = vld [vmem:[%s0] sm:$0xff]
  %v12 = vld [vmem:[%s0 + $0x8] sm:$0xff]
  %v13 = vld [vmem:[%s0 + $0x10] sm:$0xff]
  %v14 = vld [vmem:[%s0 + $0x18] sm:$0xff]
  %v15 = vld [vmem:[%s0 + $0x20] sm:$0xff]
  %v16 = vld [vmem:[%s0 + $0x28] sm:$0xff]
  %v17 = vld [vmem:[%s0 + $0x30] sm:$0xff]
  %v18 = vld [vmem:[%s0 + $0x38] sm:$0xff]
  %v19 = vld [vmem:[%s0 + $0x40] sm:$0xff]
  %v20 = vld [vmem:[%s0 + $0x48] sm:$0xff]
  %v21 = vld [vmem:[%s0 + $0x50] sm:$0xff]
  %v22 = vld [vmem:[%s0 + $0x58] sm:$0xff]
  %vm23 = vcmask 113664
  %v24 = vsel %vm23, %v11, 0.0
  %25 = vadd.xlane.f32.xlu0 %v24
  %v26 = vpop.xlane.xlu0 %25
  %v27 = vsel %vm23, %v12, 0.0
  %28 = vadd.xlane.f32.xlu0 %v27
  %v29 = vpop.xlane.xlu0 %28
  %v30 = vsel %vm23, %v13, 0.0
  %31 = vadd.xlane.f32.xlu0 %v30
  %v32 = vpop.xlane.xlu0 %31
  %v33 = vsel %vm23, %v14, 0.0
  %34 = vadd.xlane.f32.xlu0 %v33
  %v35 = vpop.xlane.xlu0 %34
  %v36 = vsel %vm23, %v15, 0.0
  %37 = vadd.xlane.f32.xlu0 %v36
  %v38 = vpop.xlane.xlu0 %37
  %v39 = vsel %vm23, %v16, 0.0
  %40 = vadd.xlane.f32.xlu0 %v39
  %v41 = vpop.xlane.xlu0 %40
  %v42 = vsel %vm23, %v17, 0.0
  %43 = vadd.xlane.f32.xlu0 %v42
  %v44 = vpop.xlane.xlu0 %43
  %v45 = vsel %vm23, %v18, 0.0
  %46 = vadd.xlane.f32.xlu0 %v45
  %v47 = vpop.xlane.xlu0 %46
  %v48 = vsel %vm23, %v19, 0.0
  %49 = vadd.xlane.f32.xlu0 %v48
  %v50 = vpop.xlane.xlu0 %49
  %v51 = vsel %vm23, %v20, 0.0
  %52 = vadd.xlane.f32.xlu0 %v51
  %v53 = vpop.xlane.xlu0 %52
  %v54 = vsel %vm23, %v21, 0.0
  %55 = vadd.xlane.f32.xlu0 %v54
  %v56 = vpop.xlane.xlu0 %55
  %v57 = vsel %vm23, %v22, 0.0
  %58 = vadd.xlane.f32.xlu0 %v57
  %v59 = vpop.xlane.xlu0 %58
  %72 = vrot.lane.b32.xlu0 %v11, 127
  %v73 = vpop.permute.xlu0 %72
  %74 = vrot.lane.b32.xlu0 %v12, 127
  %v75 = vpop.permute.xlu0 %74
  %76 = vrot.lane.b32.xlu0 %v13, 127
  %v77 = vpop.permute.xlu0 %76
  %78 = vrot.lane.b32.xlu0 %v14, 127
  %v79 = vpop.permute.xlu0 %78
  %80 = vrot.lane.b32.xlu0 %v15, 127
  %v81 = vpop.permute.xlu0 %80
  %82 = vrot.lane.b32.xlu0 %v16, 127
  %v83 = vpop.permute.xlu0 %82
  %84 = vrot.lane.b32.xlu0 %v17, 127
  %v85 = vpop.permute.xlu0 %84
  %86 = vrot.lane.b32.xlu0 %v18, 127
  %v87 = vpop.permute.xlu0 %86
  %88 = vrot.lane.b32.xlu0 %v19, 127
  %v89 = vpop.permute.xlu0 %88
  %90 = vrot.lane.b32.xlu0 %v20, 127
  %v91 = vpop.permute.xlu0 %90
  %92 = vrot.lane.b32.xlu0 %v21, 127
  %v93 = vpop.permute.xlu0 %92
  %94 = vrot.lane.b32.xlu0 %v22, 127
  %v95 = vpop.permute.xlu0 %94
  %v108 = vsel %vm23, %v73, 0.0
  %109 = vadd.xlane.f32.xlu0 %v108
  %v110 = vpop.xlane.xlu0 %109
  %v111 = vsel %vm23, %v75, 0.0
  %112 = vadd.xlane.f32.xlu0 %v111
  %v113 = vpop.xlane.xlu0 %112
  %v114 = vsel %vm23, %v77, 0.0
  %115 = vadd.xlane.f32.xlu0 %v114
  %v116 = vpop.xlane.xlu0 %115
  %v117 = vsel %vm23, %v79, 0.0
  %118 = vadd.xlane.f32.xlu0 %v117
  %v119 = vpop.xlane.xlu0 %118
  %v120 = vsel %vm23, %v81, 0.0
  %121 = vadd.xlane.f32.xlu0 %v120
  %v122 = vpop.xlane.xlu0 %121
  %v123 = vsel %vm23, %v83, 0.0
  %124 = vadd.xlane.f32.xlu0 %v123
  %v125 = vpop.xlane.xlu0 %124
  %v126 = vsel %vm23, %v85, 0.0
  %127 = vadd.xlane.f32.xlu0 %v126
  %v128 = vpop.xlane.xlu0 %127
  %v129 = vsel %vm23, %v87, 0.0
  %130 = vadd.xlane.f32.xlu0 %v129
  %v131 = vpop.xlane.xlu0 %130
  %v132 = vsel %vm23, %v89, 0.0
  %133 = vadd.xlane.f32.xlu0 %v132
  %v134 = vpop.xlane.xlu0 %133
  %v135 = vsel %vm23, %v91, 0.0
  %136 = vadd.xlane.f32.xlu0 %v135
  %v137 = vpop.xlane.xlu0 %136
  %v138 = vsel %vm23, %v93, 0.0
  %139 = vadd.xlane.f32.xlu0 %v138
  %v140 = vpop.xlane.xlu0 %139
  %v141 = vsel %vm23, %v95, 0.0
  %142 = vadd.xlane.f32.xlu0 %v141
  %v143 = vpop.xlane.xlu0 %142
  %144 = vrot.lane.b32.xlu0 %v11, 126
  %v145 = vpop.permute.xlu0 %144
  %146 = vrot.lane.b32.xlu0 %v12, 126
  %v147 = vpop.permute.xlu0 %146
  %148 = vrot.lane.b32.xlu0 %v13, 126
  %v149 = vpop.permute.xlu0 %148
  %150 = vrot.lane.b32.xlu0 %v14, 126
  %v151 = vpop.permute.xlu0 %150
  %152 = vrot.lane.b32.xlu0 %v15, 126
  %v153 = vpop.permute.xlu0 %152
  %154 = vrot.lane.b32.xlu0 %v16, 126
  %v155 = vpop.permute.xlu0 %154
  %156 = vrot.lane.b32.xlu0 %v17, 126
  %v157 = vpop.permute.xlu0 %156
  %158 = vrot.lane.b32.xlu0 %v18, 126
  %v159 = vpop.permute.xlu0 %158
  %160 = vrot.lane.b32.xlu0 %v19, 126
  %v161 = vpop.permute.xlu0 %160
  %162 = vrot.lane.b32.xlu0 %v20, 126
  %v163 = vpop.permute.xlu0 %162
  %164 = vrot.lane.b32.xlu0 %v21, 126
  %v165 = vpop.permute.xlu0 %164
  %166 = vrot.lane.b32.xlu0 %v22, 126
  %v167 = vpop.permute.xlu0 %166
  %v180 = vsel %vm23, %v145, 0.0
  %181 = vadd.xlane.f32.xlu0 %v180
  %v182 = vpop.xlane.xlu0 %181
  %v183 = vsel %vm23, %v147, 0.0
  %184 = vadd.xlane.f32.xlu0 %v183
  %v185 = vpop.xlane.xlu0 %184
  %v186 = vsel %vm23, %v149, 0.0
  %187 = vadd.xlane.f32.xlu0 %v186
  %v188 = vpop.xlane.xlu0 %187
  %v189 = vsel %vm23, %v151, 0.0
  %190 = vadd.xlane.f32.xlu0 %v189
  %v191 = vpop.xlane.xlu0 %190
  %v192 = vsel %vm23, %v153, 0.0
  %193 = vadd.xlane.f32.xlu0 %v192
  %v194 = vpop.xlane.xlu0 %193
  %v195 = vsel %vm23, %v155, 0.0
  %196 = vadd.xlane.f32.xlu0 %v195
  %v197 = vpop.xlane.xlu0 %196
  %v198 = vsel %vm23, %v157, 0.0
  %199 = vadd.xlane.f32.xlu0 %v198
  %v200 = vpop.xlane.xlu0 %199
  %v201 = vsel %vm23, %v159, 0.0
  %202 = vadd.xlane.f32.xlu0 %v201
  %v203 = vpop.xlane.xlu0 %202
  %v204 = vsel %vm23, %v161, 0.0
  %205 = vadd.xlane.f32.xlu0 %v204
  %v206 = vpop.xlane.xlu0 %205
  %v207 = vsel %vm23, %v163, 0.0
  %208 = vadd.xlane.f32.xlu0 %v207
  %v209 = vpop.xlane.xlu0 %208
  %v210 = vsel %vm23, %v165, 0.0
  %211 = vadd.xlane.f32.xlu0 %v210
  %v212 = vpop.xlane.xlu0 %211
  %v213 = vsel %vm23, %v167, 0.0
  %214 = vadd.xlane.f32.xlu0 %v213
  %v215 = vpop.xlane.xlu0 %214
  %v228 = vlaneseq
  %v229 = vand.u32 %v228, 127
  %v230 = vlaneseq
  %v231 = vshrl.u32 %v230, 7
  %v232 = vsub.s32 %v229, %v231
  %v233 = vrot.slane %v26, %v232
  %v234 = vadd.s32 %v229, 4294967288
  %v235 = vlaneseq
  %v236 = vshrl.u32 %v235, 7
  %v237 = vsub.s32 %v234, %v236
  %v238 = vrot.slane %v29, %v237
  %vm239 = vcmask 130112
  %v240 = vsel %vm239, %v238, %v233
  %v241 = vlaneseq
  %v242 = vshrl.u32 %v241, 7
  %v243 = vsub.s32 %v229, %v242
  %v244 = vrot.slane %v32, %v243
  %v245 = vlaneseq
  %v246 = vshrl.u32 %v245, 7
  %v247 = vsub.s32 %v234, %v246
  %v248 = vrot.slane %v35, %v247
  %v249 = vsel %vm239, %v248, %v244
  %v250 = vlaneseq
  %v251 = vshrl.u32 %v250, 7
  %v252 = vsub.s32 %v229, %v251
  %v253 = vrot.slane %v38, %v252
  %v254 = vlaneseq
  %v255 = vshrl.u32 %v254, 7
  %v256 = vsub.s32 %v234, %v255
  %v257 = vrot.slane %v41, %v256
  %v258 = vsel %vm239, %v257, %v253
  %v259 = vlaneseq
  %v260 = vshrl.u32 %v259, 7
  %v261 = vsub.s32 %v229, %v260
  %v262 = vrot.slane %v44, %v261
  %v263 = vlaneseq
  %v264 = vshrl.u32 %v263, 7
  %v265 = vsub.s32 %v234, %v264
  %v266 = vrot.slane %v47, %v265
  %v267 = vsel %vm239, %v266, %v262
  %v268 = vlaneseq
  %v269 = vshrl.u32 %v268, 7
  %v270 = vsub.s32 %v229, %v269
  %v271 = vrot.slane %v50, %v270
  %v272 = vlaneseq
  %v273 = vshrl.u32 %v272, 7
  %v274 = vsub.s32 %v234, %v273
  %v275 = vrot.slane %v53, %v274
  %v276 = vsel %vm239, %v275, %v271
  %v277 = vlaneseq
  %v278 = vshrl.u32 %v277, 7
  %v279 = vsub.s32 %v229, %v278
  %v280 = vrot.slane %v56, %v279
  %v281 = vlaneseq
  %v282 = vshrl.u32 %v281, 7
  %v283 = vsub.s32 %v234, %v282
  %v284 = vrot.slane %v59, %v283
  %v285 = vsel %vm239, %v284, %v280
  %vm286 = vcmask 1041409
  %v287 = vsel %vm286, %v249, %v240
  %vm288 = vcmask 1042434
  %v289 = vsel %vm288, %v258, %v287
  %v290 = vsel %vm286, %v276, %v267
  %v291 = vsel %vm288, %v285, %v290
  %vm294 = vcmask 108544
  %v295 = vsel %vm294, %v289, 0.0
  %296 = vadd.xlane.f32.xlu0 %v295
  %v297 = vpop.xlane.xlu0 %296
  %v298 = vsel %vm294, %v291, 0.0
  %299 = vadd.xlane.f32.xlu0 %v298
  %v300 = vpop.xlane.xlu0 %299
  %v301 = vld [vmem:[%s1] sm:$0x7]
  %v314 = vlaneseq
  %v315 = vshrl.u32 %v314, 7
  %v316 = vsub.s32 %v229, %v315
  %v317 = vrot.slane %v110, %v316
  %v318 = vlaneseq
  %v319 = vshrl.u32 %v318, 7
  %v320 = vsub.s32 %v234, %v319
  %v321 = vrot.slane %v113, %v320
  %v322 = vsel %vm239, %v321, %v317
  %v323 = vlaneseq
  %v324 = vshrl.u32 %v323, 7
  %v325 = vsub.s32 %v229, %v324
  %v326 = vrot.slane %v116, %v325
  %v327 = vlaneseq
  %v328 = vshrl.u32 %v327, 7
  %v329 = vsub.s32 %v234, %v328
  %v330 = vrot.slane %v119, %v329
  %v331 = vsel %vm239, %v330, %v326
  %v332 = vlaneseq
  %v333 = vshrl.u32 %v332, 7
  %v334 = vsub.s32 %v229, %v333
  %v335 = vrot.slane %v122, %v334
  %v336 = vlaneseq
  %v337 = vshrl.u32 %v336, 7
  %v338 = vsub.s32 %v234, %v337
  %v339 = vrot.slane %v125, %v338
  %v340 = vsel %vm239, %v339, %v335
  %v341 = vlaneseq
  %v342 = vshrl.u32 %v341, 7
  %v343 = vsub.s32 %v229, %v342
  %v344 = vrot.slane %v128, %v343
  %v345 = vlaneseq
  %v346 = vshrl.u32 %v345, 7
  %v347 = vsub.s32 %v234, %v346
  %v348 = vrot.slane %v131, %v347
  %v349 = vsel %vm239, %v348, %v344
  %v350 = vlaneseq
  %v351 = vshrl.u32 %v350, 7
  %v352 = vsub.s32 %v229, %v351
  %v353 = vrot.slane %v134, %v352
  %v354 = vlaneseq
  %v355 = vshrl.u32 %v354, 7
  %v356 = vsub.s32 %v234, %v355
  %v357 = vrot.slane %v137, %v356
  %v358 = vsel %vm239, %v357, %v353
  %v359 = vlaneseq
  %v360 = vshrl.u32 %v359, 7
  %v361 = vsub.s32 %v229, %v360
  %v362 = vrot.slane %v140, %v361
  %v363 = vlaneseq
  %v364 = vshrl.u32 %v363, 7
  %v365 = vsub.s32 %v234, %v364
  %v366 = vrot.slane %v143, %v365
  %v367 = vsel %vm239, %v366, %v362
  %v368 = vsel %vm286, %v331, %v322
  %v369 = vsel %vm288, %v340, %v368
  %v370 = vsel %vm286, %v358, %v349
  %v371 = vsel %vm288, %v367, %v370
  %v374 = vsel %vm294, %v369, 0.0
  %375 = vadd.xlane.f32.xlu0 %v374
  %v376 = vpop.xlane.xlu0 %375
  %v377 = vsel %vm294, %v371, 0.0
  %378 = vadd.xlane.f32.xlu0 %v377
  %v379 = vpop.xlane.xlu0 %378
  %s380 = scalar_lea.vmem %s1, 4
  %v381 = vld [vmem:[%s380] sm:$0x7]
  %v384 = vlaneseq
  %v385 = vshrl.u32 %v384, 7
  %v386 = vsub.s32 %v229, %v385
  %v387 = vrot.slane %v376, %v386
  %v388 = vlaneseq
  %v389 = vshrl.u32 %v388, 7
  %v390 = vsub.s32 %v229, %v389
  %v391 = vrot.slane %v379, %v390
  %v392 = vsel %vm286, %v391, %v387
  %vm393 = vcmask 23552
  %v394 = vsel %vm393, %v392, 0
  %vm396 = vcmask 1042432
  %v398 = vsel %vm396, %v381, 0
  %400 = vmatprep.subr.mxu0 0.0
  %401 = vmatpush1.msra.mxu0 %v398
  %402 = vmatprep.subr.mxu0 0.0
  %403 = vmatpush1.msra.mxu0 0.0
  %404 = vmatprep.subr.mxu0 0.0
  %405 = vmatpush1.msra.mxu0 0.0
  %406 = vmatprep.subr.mxu0 0.0
  %407 = vmatpush1.msra.mxu0 0.0
  %408 = vmatprep.subr.mxu0 0.0
  %409 = vmatpush1.msra.mxu0 0.0
  %410 = vmatprep.subr.mxu0 0.0
  %411 = vmatpush1.msra.mxu0 0.0
  %412 = vmatprep.subr.mxu0 0.0
  %413 = vmatpush1.msra.mxu0 0.0
  %414 = vmatprep.subr.mxu0 0.0
  %415 = vmatpush1.msra.mxu0 0.0
  %416 = vmatprep.subr.mxu0 0.0
  %417 = vmatpush1.msra.mxu0 0.0
  %418 = vmatprep.subr.mxu0 0.0
  %419 = vmatpush1.msra.mxu0 0.0
  %420 = vmatprep.subr.mxu0 0.0
  %421 = vmatpush1.msra.mxu0 0.0
  %422 = vmatprep.subr.mxu0 0.0
  %423 = vmatpush1.msra.mxu0 0.0
  %424 = vmatprep.subr.mxu0 0.0
  %425 = vmatpush1.msra.mxu0 0.0
  %426 = vmatprep.subr.mxu0 0.0
  %427 = vmatpush1.msra.mxu0 0.0
  %428 = vmatprep.subr.mxu0 0.0
  %429 = vmatpush1.msra.mxu0 0.0
  %430 = vmatprep.subr.mxu0 0.0
  %431 = vmatpush1.msra.mxu0 0.0
  %432 = vmatprep.subr.mxu0 0.0
  %433 = vmatpush1.msra.mxu0 0.0
  %434 = vmatprep.subr.mxu0 0.0
  %435 = vmatpush1.msra.mxu0 0.0
  %436 = vmatprep.subr.mxu0 0.0
  %437 = vmatpush1.msra.mxu0 0.0
  %438 = vmatprep.subr.mxu0 0.0
  %439 = vmatpush1.msra.mxu0 0.0
  %440 = vmatprep.subr.mxu0 0.0
  %441 = vmatpush1.msra.mxu0 0.0
  %442 = vmatprep.subr.mxu0 0.0
  %443 = vmatpush1.msra.mxu0 0.0
  %444 = vmatprep.subr.mxu0 0.0
  %445 = vmatpush1.msra.mxu0 0.0
  %446 = vmatprep.subr.mxu0 0.0
  %447 = vmatpush1.msra.mxu0 0.0
  %448 = vmatprep.subr.mxu0 0.0
  %449 = vmatpush1.msra.mxu0 0.0
  %450 = vmatprep.subr.mxu0 0.0
  %451 = vmatpush1.msra.mxu0 0.0
  %452 = vmatprep.subr.mxu0 0.0
  %453 = vmatpush1.msra.mxu0 0.0
  %454 = vmatprep.subr.mxu0 0.0
  %455 = vmatpush1.msra.mxu0 0.0
  %456 = vmatprep.subr.mxu0 0.0
  %457 = vmatpush1.msra.mxu0 0.0
  %458 = vmatprep.subr.mxu0 0.0
  %459 = vmatpush1.msra.mxu0 0.0
  %460 = vmatprep.subr.mxu0 0.0
  %461 = vmatpush1.msra.mxu0 0.0
  %462 = vmatprep.subr.mxu0 0.0
  %463 = vmatpush1.msra.mxu0 0.0
  %464 = vmatprep.mubr.f32.mxu0 0.0
  %465 = vmatmul.mubr.f32.gmra.mrb[0].mxu0 %v394
  %v466 = vpop.f32.mrb[0].mxu0
  %v467 = vadd.f32 0.0, %v466
  %v468 = vpop.f32.mrb[0].mxu0
  %469 = vdwg.mxu0
  %v472 = vlaneseq
  %v473 = vshrl.u32 %v472, 7
  %v474 = vsub.s32 %v229, %v473
  %v475 = vrot.slane %v297, %v474
  %v476 = vlaneseq
  %v477 = vshrl.u32 %v476, 7
  %v478 = vsub.s32 %v229, %v477
  %v479 = vrot.slane %v300, %v478
  %v480 = vsel %vm286, %v479, %v475
  %v481 = vsel %vm393, %v480, 0
  %v484 = vsel %vm396, %v301, 0
  %486 = vmatprep.subr.mxu0 0.0
  %487 = vmatpush1.msra.mxu0 %v484
  %488 = vmatprep.subr.mxu0 0.0
  %489 = vmatpush1.msra.mxu0 0.0
  %490 = vmatprep.subr.mxu0 0.0
  %491 = vmatpush1.msra.mxu0 0.0
  %492 = vmatprep.subr.mxu0 0.0
  %493 = vmatpush1.msra.mxu0 0.0
  %494 = vmatprep.subr.mxu0 0.0
  %495 = vmatpush1.msra.mxu0 0.0
  %496 = vmatprep.subr.mxu0 0.0
  %497 = vmatpush1.msra.mxu0 0.0
  %498 = vmatprep.subr.mxu0 0.0
  %499 = vmatpush1.msra.mxu0 0.0
  %500 = vmatprep.subr.mxu0 0.0
  %501 = vmatpush1.msra.mxu0 0.0
  %502 = vmatprep.subr.mxu0 0.0
  %503 = vmatpush1.msra.mxu0 0.0
  %504 = vmatprep.subr.mxu0 0.0
  %505 = vmatpush1.msra.mxu0 0.0
  %506 = vmatprep.subr.mxu0 0.0
  %507 = vmatpush1.msra.mxu0 0.0
  %508 = vmatprep.subr.mxu0 0.0
  %509 = vmatpush1.msra.mxu0 0.0
  %510 = vmatprep.subr.mxu0 0.0
  %511 = vmatpush1.msra.mxu0 0.0
  %512 = vmatprep.subr.mxu0 0.0
  %513 = vmatpush1.msra.mxu0 0.0
  %514 = vmatprep.subr.mxu0 0.0
  %515 = vmatpush1.msra.mxu0 0.0
  %516 = vmatprep.subr.mxu0 0.0
  %517 = vmatpush1.msra.mxu0 0.0
  %518 = vmatprep.subr.mxu0 0.0
  %519 = vmatpush1.msra.mxu0 0.0
  %520 = vmatprep.subr.mxu0 0.0
  %521 = vmatpush1.msra.mxu0 0.0
  %522 = vmatprep.subr.mxu0 0.0
  %523 = vmatpush1.msra.mxu0 0.0
  %524 = vmatprep.subr.mxu0 0.0
  %525 = vmatpush1.msra.mxu0 0.0
  %526 = vmatprep.subr.mxu0 0.0
  %527 = vmatpush1.msra.mxu0 0.0
  %528 = vmatprep.subr.mxu0 0.0
  %529 = vmatpush1.msra.mxu0 0.0
  %530 = vmatprep.subr.mxu0 0.0
  %531 = vmatpush1.msra.mxu0 0.0
  %532 = vmatprep.subr.mxu0 0.0
  %533 = vmatpush1.msra.mxu0 0.0
  %534 = vmatprep.subr.mxu0 0.0
  %535 = vmatpush1.msra.mxu0 0.0
  %536 = vmatprep.subr.mxu0 0.0
  %537 = vmatpush1.msra.mxu0 0.0
  %538 = vmatprep.subr.mxu0 0.0
  %539 = vmatpush1.msra.mxu0 0.0
  %540 = vmatprep.subr.mxu0 0.0
  %541 = vmatpush1.msra.mxu0 0.0
  %542 = vmatprep.subr.mxu0 0.0
  %543 = vmatpush1.msra.mxu0 0.0
  %544 = vmatprep.subr.mxu0 0.0
  %545 = vmatpush1.msra.mxu0 0.0
  %546 = vmatprep.subr.mxu0 0.0
  %547 = vmatpush1.msra.mxu0 0.0
  %548 = vmatprep.subr.mxu0 0.0
  %549 = vmatpush1.msra.mxu0 0.0
  %550 = vmatprep.mubr.f32.mxu0 0.0
  %551 = vmatmul.mubr.f32.gmra.mrb[0].mxu0 %v481
  %v552 = vpop.f32.mrb[0].mxu0
  %v553 = vadd.f32 %v467, %v552
  %v554 = vpop.f32.mrb[0].mxu0
  %555 = vdwg.mxu0
  %v568 = vlaneseq
  %v569 = vshrl.u32 %v568, 7
  %v570 = vsub.s32 %v229, %v569
  %v571 = vrot.slane %v182, %v570
  %v572 = vlaneseq
  %v573 = vshrl.u32 %v572, 7
  %v574 = vsub.s32 %v234, %v573
  %v575 = vrot.slane %v185, %v574
  %v576 = vsel %vm239, %v575, %v571
  %v577 = vlaneseq
  %v578 = vshrl.u32 %v577, 7
  %v579 = vsub.s32 %v229, %v578
  %v580 = vrot.slane %v188, %v579
  %v581 = vlaneseq
  %v582 = vshrl.u32 %v581, 7
  %v583 = vsub.s32 %v234, %v582
  %v584 = vrot.slane %v191, %v583
  %v585 = vsel %vm239, %v584, %v580
  %v586 = vlaneseq
  %v587 = vshrl.u32 %v586, 7
  %v588 = vsub.s32 %v229, %v587
  %v589 = vrot.slane %v194, %v588
  %v590 = vlaneseq
  %v591 = vshrl.u32 %v590, 7
  %v592 = vsub.s32 %v234, %v591
  %v593 = vrot.slane %v197, %v592
  %v594 = vsel %vm239, %v593, %v589
  %v595 = vlaneseq
  %v596 = vshrl.u32 %v595, 7
  %v597 = vsub.s32 %v229, %v596
  %v598 = vrot.slane %v200, %v597
  %v599 = vlaneseq
  %v600 = vshrl.u32 %v599, 7
  %v601 = vsub.s32 %v234, %v600
  %v602 = vrot.slane %v203, %v601
  %v603 = vsel %vm239, %v602, %v598
  %v604 = vlaneseq
  %v605 = vshrl.u32 %v604, 7
  %v606 = vsub.s32 %v229, %v605
  %v607 = vrot.slane %v206, %v606
  %v608 = vlaneseq
  %v609 = vshrl.u32 %v608, 7
  %v610 = vsub.s32 %v234, %v609
  %v611 = vrot.slane %v209, %v610
  %v612 = vsel %vm239, %v611, %v607
  %v613 = vlaneseq
  %v614 = vshrl.u32 %v613, 7
  %v615 = vsub.s32 %v229, %v614
  %v616 = vrot.slane %v212, %v615
  %v617 = vlaneseq
  %v618 = vshrl.u32 %v617, 7
  %v619 = vsub.s32 %v234, %v618
  %v620 = vrot.slane %v215, %v619
  %v621 = vsel %vm239, %v620, %v616
  %v622 = vsel %vm286, %v585, %v576
  %v623 = vsel %vm288, %v594, %v622
  %v624 = vsel %vm286, %v612, %v603
  %v625 = vsel %vm288, %v621, %v624
  %v628 = vsel %vm294, %v623, 0.0
  %629 = vadd.xlane.f32.xlu0 %v628
  %v630 = vpop.xlane.xlu0 %629
  %v631 = vsel %vm294, %v625, 0.0
  %632 = vadd.xlane.f32.xlu0 %v631
  %v633 = vpop.xlane.xlu0 %632
  %s634 = scalar_lea.vmem %s1, 8
  %v635 = vld [vmem:[%s634] sm:$0x7]
  %v638 = vlaneseq
  %v639 = vshrl.u32 %v638, 7
  %v640 = vsub.s32 %v229, %v639
  %v641 = vrot.slane %v630, %v640
  %v642 = vlaneseq
  %v643 = vshrl.u32 %v642, 7
  %v644 = vsub.s32 %v229, %v643
  %v645 = vrot.slane %v633, %v644
  %v646 = vsel %vm286, %v645, %v641
  %v647 = vsel %vm393, %v646, 0
  %v650 = vsel %vm396, %v635, 0
  %652 = vmatprep.subr.mxu0 0.0
  %653 = vmatpush1.msra.mxu0 %v650
  %654 = vmatprep.subr.mxu0 0.0
  %655 = vmatpush1.msra.mxu0 0.0
  %656 = vmatprep.subr.mxu0 0.0
  %657 = vmatpush1.msra.mxu0 0.0
  %658 = vmatprep.subr.mxu0 0.0
  %659 = vmatpush1.msra.mxu0 0.0
  %660 = vmatprep.subr.mxu0 0.0
  %661 = vmatpush1.msra.mxu0 0.0
  %662 = vmatprep.subr.mxu0 0.0
  %663 = vmatpush1.msra.mxu0 0.0
  %664 = vmatprep.subr.mxu0 0.0
  %665 = vmatpush1.msra.mxu0 0.0
  %666 = vmatprep.subr.mxu0 0.0
  %667 = vmatpush1.msra.mxu0 0.0
  %668 = vmatprep.subr.mxu0 0.0
  %669 = vmatpush1.msra.mxu0 0.0
  %670 = vmatprep.subr.mxu0 0.0
  %671 = vmatpush1.msra.mxu0 0.0
  %672 = vmatprep.subr.mxu0 0.0
  %673 = vmatpush1.msra.mxu0 0.0
  %674 = vmatprep.subr.mxu0 0.0
  %675 = vmatpush1.msra.mxu0 0.0
  %676 = vmatprep.subr.mxu0 0.0
  %677 = vmatpush1.msra.mxu0 0.0
  %678 = vmatprep.subr.mxu0 0.0
  %679 = vmatpush1.msra.mxu0 0.0
  %680 = vmatprep.subr.mxu0 0.0
  %681 = vmatpush1.msra.mxu0 0.0
  %682 = vmatprep.subr.mxu0 0.0
  %683 = vmatpush1.msra.mxu0 0.0
  %684 = vmatprep.subr.mxu0 0.0
  %685 = vmatpush1.msra.mxu0 0.0
  %686 = vmatprep.subr.mxu0 0.0
  %687 = vmatpush1.msra.mxu0 0.0
  %688 = vmatprep.subr.mxu0 0.0
  %689 = vmatpush1.msra.mxu0 0.0
  %690 = vmatprep.subr.mxu0 0.0
  %691 = vmatpush1.msra.mxu0 0.0
  %692 = vmatprep.subr.mxu0 0.0
  %693 = vmatpush1.msra.mxu0 0.0
  %694 = vmatprep.subr.mxu0 0.0
  %695 = vmatpush1.msra.mxu0 0.0
  %696 = vmatprep.subr.mxu0 0.0
  %697 = vmatpush1.msra.mxu0 0.0
  %698 = vmatprep.subr.mxu0 0.0
  %699 = vmatpush1.msra.mxu0 0.0
  %700 = vmatprep.subr.mxu0 0.0
  %701 = vmatpush1.msra.mxu0 0.0
  %702 = vmatprep.subr.mxu0 0.0
  %703 = vmatpush1.msra.mxu0 0.0
  %704 = vmatprep.subr.mxu0 0.0
  %705 = vmatpush1.msra.mxu0 0.0
  %706 = vmatprep.subr.mxu0 0.0
  %707 = vmatpush1.msra.mxu0 0.0
  %708 = vmatprep.subr.mxu0 0.0
  %709 = vmatpush1.msra.mxu0 0.0
  %710 = vmatprep.subr.mxu0 0.0
  %711 = vmatpush1.msra.mxu0 0.0
  %712 = vmatprep.subr.mxu0 0.0
  %713 = vmatpush1.msra.mxu0 0.0
  %714 = vmatprep.subr.mxu0 0.0
  %715 = vmatpush1.msra.mxu0 0.0
  %716 = vmatprep.mubr.f32.mxu0 0.0
  %717 = vmatmul.mubr.f32.gmra.mrb[0].mxu0 %v647
  %v718 = vpop.f32.mrb[0].mxu0
  %v719 = vadd.f32 0.0, %v718
  %v720 = vpop.f32.mrb[0].mxu0
  %721 = vdwg.mxu0
  %v722 = vadd.f32 %v553, %v719
  %v723 = vadd.s32 %v229, 1
  %v724 = vlaneseq
  %v725 = vshrl.u32 %v724, 7
  %v726 = vsub.s32 %v723, %v725
  %v727 = vrot.slane %v26, %v726
  %v728 = vadd.s32 %v229, 4294967289
  %v729 = vlaneseq
  %v730 = vshrl.u32 %v729, 7
  %v731 = vsub.s32 %v728, %v730
  %v732 = vrot.slane %v29, %v731
  %vm733 = vcmask 121912
  %v734 = vsel %vm733, %v732, %v727
  %v735 = vlaneseq
  %v736 = vshrl.u32 %v735, 7
  %v737 = vsub.s32 %v723, %v736
  %v738 = vrot.slane %v32, %v737
  %v739 = vlaneseq
  %v740 = vshrl.u32 %v739, 7
  %v741 = vsub.s32 %v728, %v740
  %v742 = vrot.slane %v35, %v741
  %v743 = vsel %vm733, %v742, %v738
  %v744 = vlaneseq
  %v745 = vshrl.u32 %v744, 7
  %v746 = vsub.s32 %v723, %v745
  %v747 = vrot.slane %v38, %v746
  %v748 = vlaneseq
  %v749 = vshrl.u32 %v748, 7
  %v750 = vsub.s32 %v728, %v749
  %v751 = vrot.slane %v41, %v750
  %v752 = vsel %vm733, %v751, %v747
  %v753 = vlaneseq
  %v754 = vshrl.u32 %v753, 7
  %v755 = vsub.s32 %v723, %v754
  %v756 = vrot.slane %v44, %v755
  %v757 = vlaneseq
  %v758 = vshrl.u32 %v757, 7
  %v759 = vsub.s32 %v728, %v758
  %v760 = vrot.slane %v47, %v759
  %v761 = vsel %vm733, %v760, %v756
  %v762 = vlaneseq
  %v763 = vshrl.u32 %v762, 7
  %v764 = vsub.s32 %v723, %v763
  %v765 = vrot.slane %v50, %v764
  %v766 = vlaneseq
  %v767 = vshrl.u32 %v766, 7
  %v768 = vsub.s32 %v728, %v767
  %v769 = vrot.slane %v53, %v768
  %v770 = vsel %vm733, %v769, %v765
  %v771 = vlaneseq
  %v772 = vshrl.u32 %v771, 7
  %v773 = vsub.s32 %v723, %v772
  %v774 = vrot.slane %v56, %v773
  %v775 = vlaneseq
  %v776 = vshrl.u32 %v775, 7
  %v777 = vsub.s32 %v728, %v776
  %v778 = vrot.slane %v59, %v777
  %v779 = vsel %vm733, %v778, %v774
  %v780 = vsel %vm286, %v743, %v734
  %v781 = vsel %vm288, %v752, %v780
  %v782 = vsel %vm286, %v770, %v761
  %v783 = vsel %vm288, %v779, %v782
  %v786 = vsel %vm294, %v781, 0.0
  %787 = vadd.xlane.f32.xlu0 %v786
  %v788 = vpop.xlane.xlu0 %787
  %v789 = vsel %vm294, %v783, 0.0
  %790 = vadd.xlane.f32.xlu0 %v789
  %v791 = vpop.xlane.xlu0 %790
  %s792 = scalar_lea.vmem %s1, 12
  %v793 = vld [vmem:[%s792] sm:$0x7]
  %v796 = vlaneseq
  %v797 = vshrl.u32 %v796, 7
  %v798 = vsub.s32 %v229, %v797
  %v799 = vrot.slane %v788, %v798
  %v800 = vlaneseq
  %v801 = vshrl.u32 %v800, 7
  %v802 = vsub.s32 %v229, %v801
  %v803 = vrot.slane %v791, %v802
  %v804 = vsel %vm286, %v803, %v799
  %v805 = vsel %vm393, %v804, 0
  %v808 = vsel %vm396, %v793, 0
  %810 = vmatprep.subr.mxu0 0.0
  %811 = vmatpush1.msra.mxu0 %v808
  %812 = vmatprep.subr.mxu0 0.0
  %813 = vmatpush1.msra.mxu0 0.0
  %814 = vmatprep.subr.mxu0 0.0
  %815 = vmatpush1.msra.mxu0 0.0
  %816 = vmatprep.subr.mxu0 0.0
  %817 = vmatpush1.msra.mxu0 0.0
  %818 = vmatprep.subr.mxu0 0.0
  %819 = vmatpush1.msra.mxu0 0.0
  %820 = vmatprep.subr.mxu0 0.0
  %821 = vmatpush1.msra.mxu0 0.0
  %822 = vmatprep.subr.mxu0 0.0
  %823 = vmatpush1.msra.mxu0 0.0
  %824 = vmatprep.subr.mxu0 0.0
  %825 = vmatpush1.msra.mxu0 0.0
  %826 = vmatprep.subr.mxu0 0.0
  %827 = vmatpush1.msra.mxu0 0.0
  %828 = vmatprep.subr.mxu0 0.0
  %829 = vmatpush1.msra.mxu0 0.0
  %830 = vmatprep.subr.mxu0 0.0
  %831 = vmatpush1.msra.mxu0 0.0
  %832 = vmatprep.subr.mxu0 0.0
  %833 = vmatpush1.msra.mxu0 0.0
  %834 = vmatprep.subr.mxu0 0.0
  %835 = vmatpush1.msra.mxu0 0.0
  %836 = vmatprep.subr.mxu0 0.0
  %837 = vmatpush1.msra.mxu0 0.0
  %838 = vmatprep.subr.mxu0 0.0
  %839 = vmatpush1.msra.mxu0 0.0
  %840 = vmatprep.subr.mxu0 0.0
  %841 = vmatpush1.msra.mxu0 0.0
  %842 = vmatprep.subr.mxu0 0.0
  %843 = vmatpush1.msra.mxu0 0.0
  %844 = vmatprep.subr.mxu0 0.0
  %845 = vmatpush1.msra.mxu0 0.0
  %846 = vmatprep.subr.mxu0 0.0
  %847 = vmatpush1.msra.mxu0 0.0
  %848 = vmatprep.subr.mxu0 0.0
  %849 = vmatpush1.msra.mxu0 0.0
  %850 = vmatprep.subr.mxu0 0.0
  %851 = vmatpush1.msra.mxu0 0.0
  %852 = vmatprep.subr.mxu0 0.0
  %853 = vmatpush1.msra.mxu0 0.0
  %854 = vmatprep.subr.mxu0 0.0
  %855 = vmatpush1.msra.mxu0 0.0
  %856 = vmatprep.subr.mxu0 0.0
  %857 = vmatpush1.msra.mxu0 0.0
  %858 = vmatprep.subr.mxu0 0.0
  %859 = vmatpush1.msra.mxu0 0.0
  %860 = vmatprep.subr.mxu0 0.0
  %861 = vmatpush1.msra.mxu0 0.0
  %862 = vmatprep.subr.mxu0 0.0
  %863 = vmatpush1.msra.mxu0 0.0
  %864 = vmatprep.subr.mxu0 0.0
  %865 = vmatpush1.msra.mxu0 0.0
  %866 = vmatprep.subr.mxu0 0.0
  %867 = vmatpush1.msra.mxu0 0.0
  %868 = vmatprep.subr.mxu0 0.0
  %869 = vmatpush1.msra.mxu0 0.0
  %870 = vmatprep.subr.mxu0 0.0
  %871 = vmatpush1.msra.mxu0 0.0
  %872 = vmatprep.subr.mxu0 0.0
  %873 = vmatpush1.msra.mxu0 0.0
  %874 = vmatprep.mubr.f32.mxu0 0.0
  %875 = vmatmul.mubr.f32.gmra.mrb[0].mxu0 %v805
  %v876 = vpop.f32.mrb[0].mxu0
  %v877 = vadd.f32 0.0, %v876
  %v878 = vpop.f32.mrb[0].mxu0
  %879 = vdwg.mxu0
  %v880 = vadd.f32 %v722, %v877
  %v881 = vlaneseq
  %v882 = vshrl.u32 %v881, 7
  %v883 = vsub.s32 %v723, %v882
  %v884 = vrot.slane %v110, %v883
  %v885 = vlaneseq
  %v886 = vshrl.u32 %v885, 7
  %v887 = vsub.s32 %v728, %v886
  %v888 = vrot.slane %v113, %v887
  %v889 = vsel %vm733, %v888, %v884
  %v890 = vlaneseq
  %v891 = vshrl.u32 %v890, 7
  %v892 = vsub.s32 %v723, %v891
  %v893 = vrot.slane %v116, %v892
  %v894 = vlaneseq
  %v895 = vshrl.u32 %v894, 7
  %v896 = vsub.s32 %v728, %v895
  %v897 = vrot.slane %v119, %v896
  %v898 = vsel %vm733, %v897, %v893
  %v899 = vlaneseq
  %v900 = vshrl.u32 %v899, 7
  %v901 = vsub.s32 %v723, %v900
  %v902 = vrot.slane %v122, %v901
  %v903 = vlaneseq
  %v904 = vshrl.u32 %v903, 7
  %v905 = vsub.s32 %v728, %v904
  %v906 = vrot.slane %v125, %v905
  %v907 = vsel %vm733, %v906, %v902
  %v908 = vlaneseq
  %v909 = vshrl.u32 %v908, 7
  %v910 = vsub.s32 %v723, %v909
  %v911 = vrot.slane %v128, %v910
  %v912 = vlaneseq
  %v913 = vshrl.u32 %v912, 7
  %v914 = vsub.s32 %v728, %v913
  %v915 = vrot.slane %v131, %v914
  %v916 = vsel %vm733, %v915, %v911
  %v917 = vlaneseq
  %v918 = vshrl.u32 %v917, 7
  %v919 = vsub.s32 %v723, %v918
  %v920 = vrot.slane %v134, %v919
  %v921 = vlaneseq
  %v922 = vshrl.u32 %v921, 7
  %v923 = vsub.s32 %v728, %v922
  %v924 = vrot.slane %v137, %v923
  %v925 = vsel %vm733, %v924, %v920
  %v926 = vlaneseq
  %v927 = vshrl.u32 %v926, 7
  %v928 = vsub.s32 %v723, %v927
  %v929 = vrot.slane %v140, %v928
  %v930 = vlaneseq
  %v931 = vshrl.u32 %v930, 7
  %v932 = vsub.s32 %v728, %v931
  %v933 = vrot.slane %v143, %v932
  %v934 = vsel %vm733, %v933, %v929
  %v935 = vsel %vm286, %v898, %v889
  %v936 = vsel %vm288, %v907, %v935
  %v937 = vsel %vm286, %v925, %v916
  %v938 = vsel %vm288, %v934, %v937
  %v941 = vsel %vm294, %v936, 0.0
  %942 = vadd.xlane.f32.xlu0 %v941
  %v943 = vpop.xlane.xlu0 %942
  %v944 = vsel %vm294, %v938, 0.0
  %945 = vadd.xlane.f32.xlu0 %v944
  %v946 = vpop.xlane.xlu0 %945
  %s947 = scalar_lea.vmem %s1, 16
  %v948 = vld [vmem:[%s947] sm:$0x7]
  %v951 = vlaneseq
  %v952 = vshrl.u32 %v951, 7
  %v953 = vsub.s32 %v229, %v952
  %v954 = vrot.slane %v943, %v953
  %v955 = vlaneseq
  %v956 = vshrl.u32 %v955, 7
  %v957 = vsub.s32 %v229, %v956
  %v958 = vrot.slane %v946, %v957
  %v959 = vsel %vm286, %v958, %v954
  %v960 = vsel %vm393, %v959, 0
  %v963 = vsel %vm396, %v948, 0
  %965 = vmatprep.subr.mxu0 0.0
  %966 = vmatpush1.msra.mxu0 %v963
  %967 = vmatprep.subr.mxu0 0.0
  %968 = vmatpush1.msra.mxu0 0.0
  %969 = vmatprep.subr.mxu0 0.0
  %970 = vmatpush1.msra.mxu0 0.0
  %971 = vmatprep.subr.mxu0 0.0
  %972 = vmatpush1.msra.mxu0 0.0
  %973 = vmatprep.subr.mxu0 0.0
  %974 = vmatpush1.msra.mxu0 0.0
  %975 = vmatprep.subr.mxu0 0.0
  %976 = vmatpush1.msra.mxu0 0.0
  %977 = vmatprep.subr.mxu0 0.0
  %978 = vmatpush1.msra.mxu0 0.0
  %979 = vmatprep.subr.mxu0 0.0
  %980 = vmatpush1.msra.mxu0 0.0
  %981 = vmatprep.subr.mxu0 0.0
  %982 = vmatpush1.msra.mxu0 0.0
  %983 = vmatprep.subr.mxu0 0.0
  %984 = vmatpush1.msra.mxu0 0.0
  %985 = vmatprep.subr.mxu0 0.0
  %986 = vmatpush1.msra.mxu0 0.0
  %987 = vmatprep.subr.mxu0 0.0
  %988 = vmatpush1.msra.mxu0 0.0
  %989 = vmatprep.subr.mxu0 0.0
  %990 = vmatpush1.msra.mxu0 0.0
  %991 = vmatprep.subr.mxu0 0.0
  %992 = vmatpush1.msra.mxu0 0.0
  %993 = vmatprep.subr.mxu0 0.0
  %994 = vmatpush1.msra.mxu0 0.0
  %995 = vmatprep.subr.mxu0 0.0
  %996 = vmatpush1.msra.mxu0 0.0
  %997 = vmatprep.subr.mxu0 0.0
  %998 = vmatpush1.msra.mxu0 0.0
  %999 = vmatprep.subr.mxu0 0.0
  %1000 = vmatpush1.msra.mxu0 0.0
  %1001 = vmatprep.subr.mxu0 0.0
  %1002 = vmatpush1.msra.mxu0 0.0
  %1003 = vmatprep.subr.mxu0 0.0
  %1004 = vmatpush1.msra.mxu0 0.0
  %1005 = vmatprep.subr.mxu0 0.0
  %1006 = vmatpush1.msra.mxu0 0.0
  %1007 = vmatprep.subr.mxu0 0.0
  %1008 = vmatpush1.msra.mxu0 0.0
  %1009 = vmatprep.subr.mxu0 0.0
  %1010 = vmatpush1.msra.mxu0 0.0
  %1011 = vmatprep.subr.mxu0 0.0
  %1012 = vmatpush1.msra.mxu0 0.0
  %1013 = vmatprep.subr.mxu0 0.0
  %1014 = vmatpush1.msra.mxu0 0.0
  %1015 = vmatprep.subr.mxu0 0.0
  %1016 = vmatpush1.msra.mxu0 0.0
  %1017 = vmatprep.subr.mxu0 0.0
  %1018 = vmatpush1.msra.mxu0 0.0
  %1019 = vmatprep.subr.mxu0 0.0
  %1020 = vmatpush1.msra.mxu0 0.0
  %1021 = vmatprep.subr.mxu0 0.0
  %1022 = vmatpush1.msra.mxu0 0.0
  %1023 = vmatprep.subr.mxu0 0.0
  %1024 = vmatpush1.msra.mxu0 0.0
  %1025 = vmatprep.subr.mxu0 0.0
  %1026 = vmatpush1.msra.mxu0 0.0
  %1027 = vmatprep.subr.mxu0 0.0
  %1028 = vmatpush1.msra.mxu0 0.0
  %1029 = vmatprep.mubr.f32.mxu0 0.0
  %1030 = vmatmul.mubr.f32.gmra.mrb[0].mxu0 %v960
  %v1031 = vpop.f32.mrb[0].mxu0
  %v1032 = vadd.f32 0.0, %v1031
  %v1033 = vpop.f32.mrb[0].mxu0
  %1034 = vdwg.mxu0
  %v1035 = vadd.f32 %v880, %v1032
  %v1036 = vlaneseq
  %v1037 = vshrl.u32 %v1036, 7
  %v1038 = vsub.s32 %v723, %v1037
  %v1039 = vrot.slane %v182, %v1038
  %v1040 = vlaneseq
  %v1041 = vshrl.u32 %v1040, 7
  %v1042 = vsub.s32 %v728, %v1041
  %v1043 = vrot.slane %v185, %v1042
  %v1044 = vsel %vm733, %v1043, %v1039
  %v1045 = vlaneseq
  %v1046 = vshrl.u32 %v1045, 7
  %v1047 = vsub.s32 %v723, %v1046
  %v1048 = vrot.slane %v188, %v1047
  %v1049 = vlaneseq
  %v1050 = vshrl.u32 %v1049, 7
  %v1051 = vsub.s32 %v728, %v1050
  %v1052 = vrot.slane %v191, %v1051
  %v1053 = vsel %vm733, %v1052, %v1048
  %v1054 = vlaneseq
  %v1055 = vshrl.u32 %v1054, 7
  %v1056 = vsub.s32 %v723, %v1055
  %v1057 = vrot.slane %v194, %v1056
  %v1058 = vlaneseq
  %v1059 = vshrl.u32 %v1058, 7
  %v1060 = vsub.s32 %v728, %v1059
  %v1061 = vrot.slane %v197, %v1060
  %v1062 = vsel %vm733, %v1061, %v1057
  %v1063 = vlaneseq
  %v1064 = vshrl.u32 %v1063, 7
  %v1065 = vsub.s32 %v723, %v1064
  %v1066 = vrot.slane %v200, %v1065
  %v1067 = vlaneseq
  %v1068 = vshrl.u32 %v1067, 7
  %v1069 = vsub.s32 %v728, %v1068
  %v1070 = vrot.slane %v203, %v1069
  %v1071 = vsel %vm733, %v1070, %v1066
  %v1072 = vlaneseq
  %v1073 = vshrl.u32 %v1072, 7
  %v1074 = vsub.s32 %v723, %v1073
  %v1075 = vrot.slane %v206, %v1074
  %v1076 = vlaneseq
  %v1077 = vshrl.u32 %v1076, 7
  %v1078 = vsub.s32 %v728, %v1077
  %v1079 = vrot.slane %v209, %v1078
  %v1080 = vsel %vm733, %v1079, %v1075
  %v1081 = vlaneseq
  %v1082 = vshrl.u32 %v1081, 7
  %v1083 = vsub.s32 %v723, %v1082
  %v1084 = vrot.slane %v212, %v1083
  %v1085 = vlaneseq
  %v1086 = vshrl.u32 %v1085, 7
  %v1087 = vsub.s32 %v728, %v1086
  %v1088 = vrot.slane %v215, %v1087
  %v1089 = vsel %vm733, %v1088, %v1084
  %v1090 = vsel %vm286, %v1053, %v1044
  %v1091 = vsel %vm288, %v1062, %v1090
  %v1092 = vsel %vm286, %v1080, %v1071
  %v1093 = vsel %vm288, %v1089, %v1092
  %v1096 = vsel %vm294, %v1091, 0.0
  %1097 = vadd.xlane.f32.xlu0 %v1096
  %v1098 = vpop.xlane.xlu0 %1097
  %v1099 = vsel %vm294, %v1093, 0.0
  %1100 = vadd.xlane.f32.xlu0 %v1099
  %v1101 = vpop.xlane.xlu0 %1100
  %s1102 = scalar_lea.vmem %s1, 20
  %v1103 = vld [vmem:[%s1102] sm:$0x7]
  %v1106 = vlaneseq
  %v1107 = vshrl.u32 %v1106, 7
  %v1108 = vsub.s32 %v229, %v1107
  %v1109 = vrot.slane %v1098, %v1108
  %v1110 = vlaneseq
  %v1111 = vshrl.u32 %v1110, 7
  %v1112 = vsub.s32 %v229, %v1111
  %v1113 = vrot.slane %v1101, %v1112
  %v1114 = vsel %vm286, %v1113, %v1109
  %v1115 = vsel %vm393, %v1114, 0
  %v1118 = vsel %vm396, %v1103, 0
  %1120 = vmatprep.subr.mxu0 0.0
  %1121 = vmatpush1.msra.mxu0 %v1118
  %1122 = vmatprep.subr.mxu0 0.0
  %1123 = vmatpush1.msra.mxu0 0.0
  %1124 = vmatprep.subr.mxu0 0.0
  %1125 = vmatpush1.msra.mxu0 0.0
  %1126 = vmatprep.subr.mxu0 0.0
  %1127 = vmatpush1.msra.mxu0 0.0
  %1128 = vmatprep.subr.mxu0 0.0
  %1129 = vmatpush1.msra.mxu0 0.0
  %1130 = vmatprep.subr.mxu0 0.0
  %1131 = vmatpush1.msra.mxu0 0.0
  %1132 = vmatprep.subr.mxu0 0.0
  %1133 = vmatpush1.msra.mxu0 0.0
  %1134 = vmatprep.subr.mxu0 0.0
  %1135 = vmatpush1.msra.mxu0 0.0
  %1136 = vmatprep.subr.mxu0 0.0
  %1137 = vmatpush1.msra.mxu0 0.0
  %1138 = vmatprep.subr.mxu0 0.0
  %1139 = vmatpush1.msra.mxu0 0.0
  %1140 = vmatprep.subr.mxu0 0.0
  %1141 = vmatpush1.msra.mxu0 0.0
  %1142 = vmatprep.subr.mxu0 0.0
  %1143 = vmatpush1.msra.mxu0 0.0
  %1144 = vmatprep.subr.mxu0 0.0
  %1145 = vmatpush1.msra.mxu0 0.0
  %1146 = vmatprep.subr.mxu0 0.0
  %1147 = vmatpush1.msra.mxu0 0.0
  %1148 = vmatprep.subr.mxu0 0.0
  %1149 = vmatpush1.msra.mxu0 0.0
  %1150 = vmatprep.subr.mxu0 0.0
  %1151 = vmatpush1.msra.mxu0 0.0
  %1152 = vmatprep.subr.mxu0 0.0
  %1153 = vmatpush1.msra.mxu0 0.0
  %1154 = vmatprep.subr.mxu0 0.0
  %1155 = vmatpush1.msra.mxu0 0.0
  %1156 = vmatprep.subr.mxu0 0.0
  %1157 = vmatpush1.msra.mxu0 0.0
  %1158 = vmatprep.subr.mxu0 0.0
  %1159 = vmatpush1.msra.mxu0 0.0
  %1160 = vmatprep.subr.mxu0 0.0
  %1161 = vmatpush1.msra.mxu0 0.0
  %1162 = vmatprep.subr.mxu0 0.0
  %1163 = vmatpush1.msra.mxu0 0.0
  %1164 = vmatprep.subr.mxu0 0.0
  %1165 = vmatpush1.msra.mxu0 0.0
  %1166 = vmatprep.subr.mxu0 0.0
  %1167 = vmatpush1.msra.mxu0 0.0
  %1168 = vmatprep.subr.mxu0 0.0
  %1169 = vmatpush1.msra.mxu0 0.0
  %1170 = vmatprep.subr.mxu0 0.0
  %1171 = vmatpush1.msra.mxu0 0.0
  %1172 = vmatprep.subr.mxu0 0.0
  %1173 = vmatpush1.msra.mxu0 0.0
  %1174 = vmatprep.subr.mxu0 0.0
  %1175 = vmatpush1.msra.mxu0 0.0
  %1176 = vmatprep.subr.mxu0 0.0
  %1177 = vmatpush1.msra.mxu0 0.0
  %1178 = vmatprep.subr.mxu0 0.0
  %1179 = vmatpush1.msra.mxu0 0.0
  %1180 = vmatprep.subr.mxu0 0.0
  %1181 = vmatpush1.msra.mxu0 0.0
  %1182 = vmatprep.subr.mxu0 0.0
  %1183 = vmatpush1.msra.mxu0 0.0
  %1184 = vmatprep.mubr.f32.mxu0 0.0
  %1185 = vmatmul.mubr.f32.gmra.mrb[0].mxu0 %v1115
  %v1186 = vpop.f32.mrb[0].mxu0
  %v1187 = vadd.f32 0.0, %v1186
  %v1188 = vpop.f32.mrb[0].mxu0
  %1189 = vdwg.mxu0
  %v1190 = vadd.f32 %v1035, %v1187
  %v1191 = vadd.s32 %v229, 2
  %v1192 = vlaneseq
  %v1193 = vshrl.u32 %v1192, 7
  %v1194 = vsub.s32 %v1191, %v1193
  %v1195 = vrot.slane %v26, %v1194
  %v1196 = vadd.s32 %v229, 4294967290
  %v1197 = vlaneseq
  %v1198 = vshrl.u32 %v1197, 7
  %v1199 = vsub.s32 %v1196, %v1198
  %v1200 = vrot.slane %v29, %v1199
  %vm1201 = vcmask 113712
  %v1202 = vsel %vm1201, %v1200, %v1195
  %v1203 = vlaneseq
  %v1204 = vshrl.u32 %v1203, 7
  %v1205 = vsub.s32 %v1191, %v1204
  %v1206 = vrot.slane %v32, %v1205
  %v1207 = vlaneseq
  %v1208 = vshrl.u32 %v1207, 7
  %v1209 = vsub.s32 %v1196, %v1208
  %v1210 = vrot.slane %v35, %v1209
  %v1211 = vsel %vm1201, %v1210, %v1206
  %v1212 = vlaneseq
  %v1213 = vshrl.u32 %v1212, 7
  %v1214 = vsub.s32 %v1191, %v1213
  %v1215 = vrot.slane %v38, %v1214
  %v1216 = vlaneseq
  %v1217 = vshrl.u32 %v1216, 7
  %v1218 = vsub.s32 %v1196, %v1217
  %v1219 = vrot.slane %v41, %v1218
  %v1220 = vsel %vm1201, %v1219, %v1215
  %v1221 = vlaneseq
  %v1222 = vshrl.u32 %v1221, 7
  %v1223 = vsub.s32 %v1191, %v1222
  %v1224 = vrot.slane %v44, %v1223
  %v1225 = vlaneseq
  %v1226 = vshrl.u32 %v1225, 7
  %v1227 = vsub.s32 %v1196, %v1226
  %v1228 = vrot.slane %v47, %v1227
  %v1229 = vsel %vm1201, %v1228, %v1224
  %v1230 = vlaneseq
  %v1231 = vshrl.u32 %v1230, 7
  %v1232 = vsub.s32 %v1191, %v1231
  %v1233 = vrot.slane %v50, %v1232
  %v1234 = vlaneseq
  %v1235 = vshrl.u32 %v1234, 7
  %v1236 = vsub.s32 %v1196, %v1235
  %v1237 = vrot.slane %v53, %v1236
  %v1238 = vsel %vm1201, %v1237, %v1233
  %v1239 = vlaneseq
  %v1240 = vshrl.u32 %v1239, 7
  %v1241 = vsub.s32 %v1191, %v1240
  %v1242 = vrot.slane %v56, %v1241
  %v1243 = vlaneseq
  %v1244 = vshrl.u32 %v1243, 7
  %v1245 = vsub.s32 %v1196, %v1244
  %v1246 = vrot.slane %v59, %v1245
  %v1247 = vsel %vm1201, %v1246, %v1242
  %v1248 = vsel %vm286, %v1211, %v1202
  %v1249 = vsel %vm288, %v1220, %v1248
  %v1250 = vsel %vm286, %v1238, %v1229
  %v1251 = vsel %vm288, %v1247, %v1250
  %v1254 = vsel %vm294, %v1249, 0.0
  %1255 = vadd.xlane.f32.xlu0 %v1254
  %v1256 = vpop.xlane.xlu0 %1255
  %v1257 = vsel %vm294, %v1251, 0.0
  %1258 = vadd.xlane.f32.xlu0 %v1257
  %v1259 = vpop.xlane.xlu0 %1258
  %s1260 = scalar_lea.vmem %s1, 24
  %v1261 = vld [vmem:[%s1260] sm:$0x7]
  %v1264 = vlaneseq
  %v1265 = vshrl.u32 %v1264, 7
  %v1266 = vsub.s32 %v229, %v1265
  %v1267 = vrot.slane %v1256, %v1266
  %v1268 = vlaneseq
  %v1269 = vshrl.u32 %v1268, 7
  %v1270 = vsub.s32 %v229, %v1269
  %v1271 = vrot.slane %v1259, %v1270
  %v1272 = vsel %vm286, %v1271, %v1267
  %v1273 = vsel %vm393, %v1272, 0
  %v1276 = vsel %vm396, %v1261, 0
  %1278 = vmatprep.subr.mxu0 0.0
  %1279 = vmatpush1.msra.mxu0 %v1276
  %1280 = vmatprep.subr.mxu0 0.0
  %1281 = vmatpush1.msra.mxu0 0.0
  %1282 = vmatprep.subr.mxu0 0.0
  %1283 = vmatpush1.msra.mxu0 0.0
  %1284 = vmatprep.subr.mxu0 0.0
  %1285 = vmatpush1.msra.mxu0 0.0
  %1286 = vmatprep.subr.mxu0 0.0
  %1287 = vmatpush1.msra.mxu0 0.0
  %1288 = vmatprep.subr.mxu0 0.0
  %1289 = vmatpush1.msra.mxu0 0.0
  %1290 = vmatprep.subr.mxu0 0.0
  %1291 = vmatpush1.msra.mxu0 0.0
  %1292 = vmatprep.subr.mxu0 0.0
  %1293 = vmatpush1.msra.mxu0 0.0
  %1294 = vmatprep.subr.mxu0 0.0
  %1295 = vmatpush1.msra.mxu0 0.0
  %1296 = vmatprep.subr.mxu0 0.0
  %1297 = vmatpush1.msra.mxu0 0.0
  %1298 = vmatprep.subr.mxu0 0.0
  %1299 = vmatpush1.msra.mxu0 0.0
  %1300 = vmatprep.subr.mxu0 0.0
  %1301 = vmatpush1.msra.mxu0 0.0
  %1302 = vmatprep.subr.mxu0 0.0
  %1303 = vmatpush1.msra.mxu0 0.0
  %1304 = vmatprep.subr.mxu0 0.0
  %1305 = vmatpush1.msra.mxu0 0.0
  %1306 = vmatprep.subr.mxu0 0.0
  %1307 = vmatpush1.msra.mxu0 0.0
  %1308 = vmatprep.subr.mxu0 0.0
  %1309 = vmatpush1.msra.mxu0 0.0
  %1310 = vmatprep.subr.mxu0 0.0
  %1311 = vmatpush1.msra.mxu0 0.0
  %1312 = vmatprep.subr.mxu0 0.0
  %1313 = vmatpush1.msra.mxu0 0.0
  %1314 = vmatprep.subr.mxu0 0.0
  %1315 = vmatpush1.msra.mxu0 0.0
  %1316 = vmatprep.subr.mxu0 0.0
  %1317 = vmatpush1.msra.mxu0 0.0
  %1318 = vmatprep.subr.mxu0 0.0
  %1319 = vmatpush1.msra.mxu0 0.0
  %1320 = vmatprep.subr.mxu0 0.0
  %1321 = vmatpush1.msra.mxu0 0.0
  %1322 = vmatprep.subr.mxu0 0.0
  %1323 = vmatpush1.msra.mxu0 0.0
  %1324 = vmatprep.subr.mxu0 0.0
  %1325 = vmatpush1.msra.mxu0 0.0
  %1326 = vmatprep.subr.mxu0 0.0
  %1327 = vmatpush1.msra.mxu0 0.0
  %1328 = vmatprep.subr.mxu0 0.0
  %1329 = vmatpush1.msra.mxu0 0.0
  %1330 = vmatprep.subr.mxu0 0.0
  %1331 = vmatpush1.msra.mxu0 0.0
  %1332 = vmatprep.subr.mxu0 0.0
  %1333 = vmatpush1.msra.mxu0 0.0
  %1334 = vmatprep.subr.mxu0 0.0
  %1335 = vmatpush1.msra.mxu0 0.0
  %1336 = vmatprep.subr.mxu0 0.0
  %1337 = vmatpush1.msra.mxu0 0.0
  %1338 = vmatprep.subr.mxu0 0.0
  %1339 = vmatpush1.msra.mxu0 0.0
  %1340 = vmatprep.subr.mxu0 0.0
  %1341 = vmatpush1.msra.mxu0 0.0
  %1342 = vmatprep.mubr.f32.mxu0 0.0
  %1343 = vmatmul.mubr.f32.gmra.mrb[0].mxu0 %v1273
  %v1344 = vpop.f32.mrb[0].mxu0
  %v1345 = vadd.f32 0.0, %v1344
  %v1346 = vpop.f32.mrb[0].mxu0
  %1347 = vdwg.mxu0
  %v1348 = vadd.f32 %v1190, %v1345
  %v1349 = vlaneseq
  %v1350 = vshrl.u32 %v1349, 7
  %v1351 = vsub.s32 %v1191, %v1350
  %v1352 = vrot.slane %v110, %v1351
  %v1353 = vlaneseq
  %v1354 = vshrl.u32 %v1353, 7
  %v1355 = vsub.s32 %v1196, %v1354
  %v1356 = vrot.slane %v113, %v1355
  %v1357 = vsel %vm1201, %v1356, %v1352
  %v1358 = vlaneseq
  %v1359 = vshrl.u32 %v1358, 7
  %v1360 = vsub.s32 %v1191, %v1359
  %v1361 = vrot.slane %v116, %v1360
  %v1362 = vlaneseq
  %v1363 = vshrl.u32 %v1362, 7
  %v1364 = vsub.s32 %v1196, %v1363
  %v1365 = vrot.slane %v119, %v1364
  %v1366 = vsel %vm1201, %v1365, %v1361
  %v1367 = vlaneseq
  %v1368 = vshrl.u32 %v1367, 7
  %v1369 = vsub.s32 %v1191, %v1368
  %v1370 = vrot.slane %v122, %v1369
  %v1371 = vlaneseq
  %v1372 = vshrl.u32 %v1371, 7
  %v1373 = vsub.s32 %v1196, %v1372
  %v1374 = vrot.slane %v125, %v1373
  %v1375 = vsel %vm1201, %v1374, %v1370
  %v1376 = vlaneseq
  %v1377 = vshrl.u32 %v1376, 7
  %v1378 = vsub.s32 %v1191, %v1377
  %v1379 = vrot.slane %v128, %v1378
  %v1380 = vlaneseq
  %v1381 = vshrl.u32 %v1380, 7
  %v1382 = vsub.s32 %v1196, %v1381
  %v1383 = vrot.slane %v131, %v1382
  %v1384 = vsel %vm1201, %v1383, %v1379
  %v1385 = vlaneseq
  %v1386 = vshrl.u32 %v1385, 7
  %v1387 = vsub.s32 %v1191, %v1386
  %v1388 = vrot.slane %v134, %v1387
  %v1389 = vlaneseq
  %v1390 = vshrl.u32 %v1389, 7
  %v1391 = vsub.s32 %v1196, %v1390
  %v1392 = vrot.slane %v137, %v1391
  %v1393 = vsel %vm1201, %v1392, %v1388
  %v1394 = vlaneseq
  %v1395 = vshrl.u32 %v1394, 7
  %v1396 = vsub.s32 %v1191, %v1395
  %v1397 = vrot.slane %v140, %v1396
  %v1398 = vlaneseq
  %v1399 = vshrl.u32 %v1398, 7
  %v1400 = vsub.s32 %v1196, %v1399
  %v1401 = vrot.slane %v143, %v1400
  %v1402 = vsel %vm1201, %v1401, %v1397
  %v1403 = vsel %vm286, %v1366, %v1357
  %v1404 = vsel %vm288, %v1375, %v1403
  %v1405 = vsel %vm286, %v1393, %v1384
  %v1406 = vsel %vm288, %v1402, %v1405
  %v1409 = vsel %vm294, %v1404, 0.0
  %1410 = vadd.xlane.f32.xlu0 %v1409
  %v1411 = vpop.xlane.xlu0 %1410
  %v1412 = vsel %vm294, %v1406, 0.0
  %1413 = vadd.xlane.f32.xlu0 %v1412
  %v1414 = vpop.xlane.xlu0 %1413
  %s1415 = scalar_lea.vmem %s1, 28
  %v1416 = vld [vmem:[%s1415] sm:$0x7]
  %v1419 = vlaneseq
  %v1420 = vshrl.u32 %v1419, 7
  %v1421 = vsub.s32 %v229, %v1420
  %v1422 = vrot.slane %v1411, %v1421
  %v1423 = vlaneseq
  %v1424 = vshrl.u32 %v1423, 7
  %v1425 = vsub.s32 %v229, %v1424
  %v1426 = vrot.slane %v1414, %v1425
  %v1427 = vsel %vm286, %v1426, %v1422
  %v1428 = vsel %vm393, %v1427, 0
  %v1431 = vsel %vm396, %v1416, 0
  %1433 = vmatprep.subr.mxu0 0.0
  %1434 = vmatpush1.msra.mxu0 %v1431
  %1435 = vmatprep.subr.mxu0 0.0
  %1436 = vmatpush1.msra.mxu0 0.0
  %1437 = vmatprep.subr.mxu0 0.0
  %1438 = vmatpush1.msra.mxu0 0.0
  %1439 = vmatprep.subr.mxu0 0.0
  %1440 = vmatpush1.msra.mxu0 0.0
  %1441 = vmatprep.subr.mxu0 0.0
  %1442 = vmatpush1.msra.mxu0 0.0
  %1443 = vmatprep.subr.mxu0 0.0
  %1444 = vmatpush1.msra.mxu0 0.0
  %1445 = vmatprep.subr.mxu0 0.0
  %1446 = vmatpush1.msra.mxu0 0.0
  %1447 = vmatprep.subr.mxu0 0.0
  %1448 = vmatpush1.msra.mxu0 0.0
  %1449 = vmatprep.subr.mxu0 0.0
  %1450 = vmatpush1.msra.mxu0 0.0
  %1451 = vmatprep.subr.mxu0 0.0
  %1452 = vmatpush1.msra.mxu0 0.0
  %1453 = vmatprep.subr.mxu0 0.0
  %1454 = vmatpush1.msra.mxu0 0.0
  %1455 = vmatprep.subr.mxu0 0.0
  %1456 = vmatpush1.msra.mxu0 0.0
  %1457 = vmatprep.subr.mxu0 0.0
  %1458 = vmatpush1.msra.mxu0 0.0
  %1459 = vmatprep.subr.mxu0 0.0
  %1460 = vmatpush1.msra.mxu0 0.0
  %1461 = vmatprep.subr.mxu0 0.0
  %1462 = vmatpush1.msra.mxu0 0.0
  %1463 = vmatprep.subr.mxu0 0.0
  %1464 = vmatpush1.msra.mxu0 0.0
  %1465 = vmatprep.subr.mxu0 0.0
  %1466 = vmatpush1.msra.mxu0 0.0
  %1467 = vmatprep.subr.mxu0 0.0
  %1468 = vmatpush1.msra.mxu0 0.0
  %1469 = vmatprep.subr.mxu0 0.0
  %1470 = vmatpush1.msra.mxu0 0.0
  %1471 = vmatprep.subr.mxu0 0.0
  %1472 = vmatpush1.msra.mxu0 0.0
  %1473 = vmatprep.subr.mxu0 0.0
  %1474 = vmatpush1.msra.mxu0 0.0
  %1475 = vmatprep.subr.mxu0 0.0
  %1476 = vmatpush1.msra.mxu0 0.0
  %1477 = vmatprep.subr.mxu0 0.0
  %1478 = vmatpush1.msra.mxu0 0.0
  %1479 = vmatprep.subr.mxu0 0.0
  %1480 = vmatpush1.msra.mxu0 0.0
  %1481 = vmatprep.subr.mxu0 0.0
  %1482 = vmatpush1.msra.mxu0 0.0
  %1483 = vmatprep.subr.mxu0 0.0
  %1484 = vmatpush1.msra.mxu0 0.0
  %1485 = vmatprep.subr.mxu0 0.0
  %1486 = vmatpush1.msra.mxu0 0.0
  %1487 = vmatprep.subr.mxu0 0.0
  %1488 = vmatpush1.msra.mxu0 0.0
  %1489 = vmatprep.subr.mxu0 0.0
  %1490 = vmatpush1.msra.mxu0 0.0
  %1491 = vmatprep.subr.mxu0 0.0
  %1492 = vmatpush1.msra.mxu0 0.0
  %1493 = vmatprep.subr.mxu0 0.0
  %1494 = vmatpush1.msra.mxu0 0.0
  %1495 = vmatprep.subr.mxu0 0.0
  %1496 = vmatpush1.msra.mxu0 0.0
  %1497 = vmatprep.mubr.f32.mxu0 0.0
  %1498 = vmatmul.mubr.f32.gmra.mrb[0].mxu0 %v1428
  %v1499 = vpop.f32.mrb[0].mxu0
  %v1500 = vadd.f32 0.0, %v1499
  %v1501 = vpop.f32.mrb[0].mxu0
  %1502 = vdwg.mxu0
  %v1503 = vadd.f32 %v1348, %v1500
  %v1504 = vlaneseq
  %v1505 = vshrl.u32 %v1504, 7
  %v1506 = vsub.s32 %v1191, %v1505
  %v1507 = vrot.slane %v182, %v1506
  %v1508 = vlaneseq
  %v1509 = vshrl.u32 %v1508, 7
  %v1510 = vsub.s32 %v1196, %v1509
  %v1511 = vrot.slane %v185, %v1510
  %v1512 = vsel %vm1201, %v1511, %v1507
  %v1513 = vlaneseq
  %v1514 = vshrl.u32 %v1513, 7
  %v1515 = vsub.s32 %v1191, %v1514
  %v1516 = vrot.slane %v188, %v1515
  %v1517 = vlaneseq
  %v1518 = vshrl.u32 %v1517, 7
  %v1519 = vsub.s32 %v1196, %v1518
  %v1520 = vrot.slane %v191, %v1519
  %v1521 = vsel %vm1201, %v1520, %v1516
  %v1522 = vlaneseq
  %v1523 = vshrl.u32 %v1522, 7
  %v1524 = vsub.s32 %v1191, %v1523
  %v1525 = vrot.slane %v194, %v1524
  %v1526 = vlaneseq
  %v1527 = vshrl.u32 %v1526, 7
  %v1528 = vsub.s32 %v1196, %v1527
  %v1529 = vrot.slane %v197, %v1528
  %v1530 = vsel %vm1201, %v1529, %v1525
  %v1531 = vlaneseq
  %v1532 = vshrl.u32 %v1531, 7
  %v1533 = vsub.s32 %v1191, %v1532
  %v1534 = vrot.slane %v200, %v1533
  %v1535 = vlaneseq
  %v1536 = vshrl.u32 %v1535, 7
  %v1537 = vsub.s32 %v1196, %v1536
  %v1538 = vrot.slane %v203, %v1537
  %v1539 = vsel %vm1201, %v1538, %v1534
  %v1540 = vlaneseq
  %v1541 = vshrl.u32 %v1540, 7
  %v1542 = vsub.s32 %v1191, %v1541
  %v1543 = vrot.slane %v206, %v1542
  %v1544 = vlaneseq
  %v1545 = vshrl.u32 %v1544, 7
  %v1546 = vsub.s32 %v1196, %v1545
  %v1547 = vrot.slane %v209, %v1546
  %v1548 = vsel %vm1201, %v1547, %v1543
  %v1549 = vlaneseq
  %v1550 = vshrl.u32 %v1549, 7
  %v1551 = vsub.s32 %v1191, %v1550
  %v1552 = vrot.slane %v212, %v1551
  %v1553 = vlaneseq
  %v1554 = vshrl.u32 %v1553, 7
  %v1555 = vsub.s32 %v1196, %v1554
  %v1556 = vrot.slane %v215, %v1555
  %v1557 = vsel %vm1201, %v1556, %v1552
  %v1558 = vsel %vm286, %v1521, %v1512
  %v1559 = vsel %vm288, %v1530, %v1558
  %v1560 = vsel %vm286, %v1548, %v1539
  %v1561 = vsel %vm288, %v1557, %v1560
  %v1564 = vsel %vm294, %v1559, 0.0
  %1565 = vadd.xlane.f32.xlu0 %v1564
  %v1566 = vpop.xlane.xlu0 %1565
  %v1567 = vsel %vm294, %v1561, 0.0
  %1568 = vadd.xlane.f32.xlu0 %v1567
  %v1569 = vpop.xlane.xlu0 %1568
  %s1570 = scalar_lea.vmem %s1, 32
  %v1571 = vld [vmem:[%s1570] sm:$0x7]
  %v1574 = vlaneseq
  %v1575 = vshrl.u32 %v1574, 7
  %v1576 = vsub.s32 %v229, %v1575
  %v1577 = vrot.slane %v1566, %v1576
  %v1578 = vlaneseq
  %v1579 = vshrl.u32 %v1578, 7
  %v1580 = vsub.s32 %v229, %v1579
  %v1581 = vrot.slane %v1569, %v1580
  %v1582 = vsel %vm286, %v1581, %v1577
  %v1583 = vsel %vm393, %v1582, 0
  %v1586 = vsel %vm396, %v1571, 0
  %1588 = vmatprep.subr.mxu0 0.0
  %1589 = vmatpush1.msra.mxu0 %v1586
  %1590 = vmatprep.subr.mxu0 0.0
  %1591 = vmatpush1.msra.mxu0 0.0
  %1592 = vmatprep.subr.mxu0 0.0
  %1593 = vmatpush1.msra.mxu0 0.0
  %1594 = vmatprep.subr.mxu0 0.0
  %1595 = vmatpush1.msra.mxu0 0.0
  %1596 = vmatprep.subr.mxu0 0.0
  %1597 = vmatpush1.msra.mxu0 0.0
  %1598 = vmatprep.subr.mxu0 0.0
  %1599 = vmatpush1.msra.mxu0 0.0
  %1600 = vmatprep.subr.mxu0 0.0
  %1601 = vmatpush1.msra.mxu0 0.0
  %1602 = vmatprep.subr.mxu0 0.0
  %1603 = vmatpush1.msra.mxu0 0.0
  %1604 = vmatprep.subr.mxu0 0.0
  %1605 = vmatpush1.msra.mxu0 0.0
  %1606 = vmatprep.subr.mxu0 0.0
  %1607 = vmatpush1.msra.mxu0 0.0
  %1608 = vmatprep.subr.mxu0 0.0
  %1609 = vmatpush1.msra.mxu0 0.0
  %1610 = vmatprep.subr.mxu0 0.0
  %1611 = vmatpush1.msra.mxu0 0.0
  %1612 = vmatprep.subr.mxu0 0.0
  %1613 = vmatpush1.msra.mxu0 0.0
  %1614 = vmatprep.subr.mxu0 0.0
  %1615 = vmatpush1.msra.mxu0 0.0
  %1616 = vmatprep.subr.mxu0 0.0
  %1617 = vmatpush1.msra.mxu0 0.0
  %1618 = vmatprep.subr.mxu0 0.0
  %1619 = vmatpush1.msra.mxu0 0.0
  %1620 = vmatprep.subr.mxu0 0.0
  %1621 = vmatpush1.msra.mxu0 0.0
  %1622 = vmatprep.subr.mxu0 0.0
  %1623 = vmatpush1.msra.mxu0 0.0
  %1624 = vmatprep.subr.mxu0 0.0
  %1625 = vmatpush1.msra.mxu0 0.0
  %1626 = vmatprep.subr.mxu0 0.0
  %1627 = vmatpush1.msra.mxu0 0.0
  %1628 = vmatprep.subr.mxu0 0.0
  %1629 = vmatpush1.msra.mxu0 0.0
  %1630 = vmatprep.subr.mxu0 0.0
  %1631 = vmatpush1.msra.mxu0 0.0
  %1632 = vmatprep.subr.mxu0 0.0
  %1633 = vmatpush1.msra.mxu0 0.0
  %1634 = vmatprep.subr.mxu0 0.0
  %1635 = vmatpush1.msra.mxu0 0.0
  %1636 = vmatprep.subr.mxu0 0.0
  %1637 = vmatpush1.msra.mxu0 0.0
  %1638 = vmatprep.subr.mxu0 0.0
  %1639 = vmatpush1.msra.mxu0 0.0
  %1640 = vmatprep.subr.mxu0 0.0
  %1641 = vmatpush1.msra.mxu0 0.0
  %1642 = vmatprep.subr.mxu0 0.0
  %1643 = vmatpush1.msra.mxu0 0.0
  %1644 = vmatprep.subr.mxu0 0.0
  %1645 = vmatpush1.msra.mxu0 0.0
  %1646 = vmatprep.subr.mxu0 0.0
  %1647 = vmatpush1.msra.mxu0 0.0
  %1648 = vmatprep.subr.mxu0 0.0
  %1649 = vmatpush1.msra.mxu0 0.0
  %1650 = vmatprep.subr.mxu0 0.0
  %1651 = vmatpush1.msra.mxu0 0.0
  %1652 = vmatprep.mubr.f32.mxu0 0.0
  %1653 = vmatmul.mubr.f32.gmra.mrb[0].mxu0 %v1583
  %v1654 = vpop.f32.mrb[0].mxu0
  %v1655 = vadd.f32 0.0, %v1654
  %v1656 = vpop.f32.mrb[0].mxu0
  %1657 = vdwg.mxu0
  %v1658 = vadd.f32 %v1503, %v1655
  %vm1659 = vcmask 254976
  %1660 = vst.msk [vmem:[%s2] sm:$0x3] %vm1659, %v1658
  // Predicated region
  $region10: #{model_forward.1} parent=0 // pred_check
    _
  $region11: #{model_forward.1} parent=0 // pred_check_branch
    %1662 = sbr.rel (0) target = $region13
  $region12: #{model_forward.1} parent=0 // pred_region
    _
  $region13: #{model_forward.1} parent=0 // pred_fallthru
    _
  // Predicated region
  $region14: #{model_forward.1} parent=0 // pred_check
    _
  $region15: #{model_forward.1} parent=0 // pred_check_branch
    %1664 = sbr.rel (0) target = $region17
  $region16: #{model_forward.1} parent=0 // pred_region
    _
  $region17: #{model_forward.1} parent=0 // pred_fallthru
    _

</llo_original>
